<compile_context>
chip_gen: v7x
topology: tpu7x:2x2x1
jax: 0.10.0
libtpu: 0.0.40
codegen_flags: <defaults>
</compile_context>

<pallas_src>
import math
from functools import partial

import jax
import jax.numpy as jnp
import numpy as np
from jax.experimental import pallas as pl
from jax.experimental.pallas import tpu as pltpu

OUT_PAD = 128  # lane-dense padded width for the 3-wide output


# ----------------------------------------------------------------------------
# Fused kernel
# ----------------------------------------------------------------------------
def _fused_kernel_factory(n_global, n_point_rest, cb, k, compute_dtype):
    """Fused decoder kernel.

    Ref order:
      features, ghb,
      [Wg_i, bg_i] * n_global,
      W_glob,
      [Wp_i, bp_i] * n_point_rest   (last pair padded to OUT_PAD lanes),
      out,
      xh_scratch, [h_scratch if n_point_rest > 0]
    """
    n_in = 2 + 2 * n_global + 1 + 2 * n_point_rest

    def kernel(*refs):
        feat_ref, ghb_ref = refs[0], refs[1]
        out_ref = refs[n_in]
        xh_sc = refs[n_in + 1]
        h_sc = refs[n_in + 2] if n_point_rest > 0 else out_ref

        p = 2
        # ---- global MLP (Linear + ReLU chain), bf16 MXU / f32 accumulate ----
        x = feat_ref[...]
        for _ in range(n_global):
            w = refs[p][...]
            b = refs[p + 1][...]
            p += 2
            x = jnp.maximum(
                jnp.dot(x.astype(compute_dtype), w,
                        preferred_element_type=jnp.float32) + b, 0.0)

        # ---- first point layer: global half on MXU, grid half precomputed ----
        w_glob = refs[p][...]
        p += 1
        xh_sc[...] = jnp.dot(x.astype(compute_dtype), w_glob,
                             preferred_element_type=jnp.float32)     # (CB, H0) f32
        ghb = ghb_ref[...]                                           # (K,  H0) f32

        # repeat_interleave(global, K) + tile(grid) realized as per-cluster
        # sublane-broadcast adds (load/VPU slots; no one-hot MXU matmuls).
        for c in range(cb):                                          # static loop
            hrow = xh_sc[pl.ds(c, 1), :] + ghb        # (1,H0)+(K,H0) -> (K,H0)
            if n_point_rest == 0:
                hrow = jnp.tanh(hrow)                 # single point layer -> tanh
            else:
                hrow = jnp.maximum(hrow, 0.0)         # ReLU
            h_sc[pl.ds(c * k, k), :] = hrow.astype(h_sc.dtype)

        # ---- remaining point layers ----
        if n_point_rest > 0:
            h = h_sc[...]
            for i in range(n_point_rest):
                w = refs[p][...]
                b = refs[p + 1][...]
                p += 2
                h = jnp.dot(h.astype(compute_dtype), w,
                            preferred_element_type=jnp.float32) + b
                if i < n_point_rest - 1:
                    h = jnp.maximum(h, 0.0)           # ReLU (VPU)
                else:
                    h = jnp.tanh(h)                   # tanh (EUP); pad lanes -> 0
            out_ref[...] = h.astype(out_ref.dtype)

    return kernel


# ----------------------------------------------------------------------------
# Parameter preparation (split + host-precompute first point layer, pad last
# layer to 128 lanes, bf16 weights for the MXU)
# ----------------------------------------------------------------------------
def _pad_cols(a, width):
    return jnp.pad(a, ((0, 0), (0, width - a.shape[1])))


def prepare_decoder_params(global_params, point_params, unit_grid, use_bf16=True):
    wdt = jnp.bfloat16 if use_bf16 else jnp.float32

    gp = [(w.astype(wdt), b.reshape(1, -1).astype(jnp.float32))
          for (w, b) in global_params]

    w0, b0 = point_params[0]
    w_grid = w0[:2].astype(jnp.float32)   # (2, H0): multiplies the unit grid (x, y)
    w_glob = w0[2:]                       # (G, H0): multiplies the global code
    b0 = b0.reshape(1, -1).astype(jnp.float32)

    n_rest = len(point_params) - 1
    rest = []
    if n_rest == 0:
        # first point layer is also the last -> pad to lane-dense width
        w_grid = _pad_cols(w_grid, OUT_PAD)
        w_glob = _pad_cols(w_glob, OUT_PAD)
        b0 = _pad_cols(b0, OUT_PAD)
    else:
        for i, (w, b) in enumerate(point_params[1:]):
            br = b.reshape(1, -1).astype(jnp.float32)
            if i == n_rest - 1:
                w = _pad_cols(w, OUT_PAD)       # zero pad -> tanh(0)=0 in lanes 3..127
                br = _pad_cols(br, OUT_PAD)
            rest.append((w.astype(wdt), br))

    # Grid-side term of the first point layer, precomputed once in f32 (exact):
    #   ghb[r] = unit_grid[r] @ W0[:2] + b0          (K, H0)
    ghb = unit_grid.astype(jnp.float32) @ w_grid + b0
    return gp, (w_glob.astype(wdt), ghb), rest


# ----------------------------------------------------------------------------
# Cluster-block selection
# ----------------------------------------------------------------------------
def _choose_cluster_block(nb_clusters, k, target_rows=2048, max_cb=128):
    cb = max(1, min(max_cb, max(1, target_rows // max(k, 1))))
    # keep >= 2 grid steps when possible so ("parallel",) splits across both
    # TensorCores on v7x
    cb = min(cb, max(1, (nb_clusters + 1) // 2))
    # sublane alignment: block row counts (CB and CB*K) must be multiples of 8
    cb = max(8, ((cb + 7) // 8) * 8)
    return cb


# ----------------------------------------------------------------------------
# Module-level forward
# ----------------------------------------------------------------------------
def create_grid(nb_neighbors):
    nb = int(math.sqrt(nb_neighbors))
    dist = 1.0 / nb
    rows = []
    for i in range(nb):
        for j in range(nb):
            rows.append([dist * (i + 0.5), dist * (j + 0.5)])
    return jnp.asarray(rows, dtype=jnp.float32)  # (nb*nb, 2)


@partial(jax.jit, static_argnames=("cluster_block",))
def grid_deformation_decoder_forward(features, prepared_params, cluster_block=None):
    gp, (w_glob, ghb), rest = prepared_params
    nb_clusters, input_size = features.shape
    K, H0 = ghb.shape

    if cluster_block is None:
        CB = _choose_cluster_block(nb_clusters, K)
    else:
        CB = max(8, ((int(cluster_block) + 7) // 8) * 8)

    c_pad = ((nb_clusters + CB - 1) // CB) * CB
    if c_pad != nb_clusters:
        features = jnp.pad(features, ((0, c_pad - nb_clusters), (0, 0)))
    num_blocks = c_pad // CB

    flat_inputs = [features, ghb]
    for w, b in gp:
        flat_inputs += [w, b]
    flat_inputs.append(w_glob)
    for w, b in rest:
        flat_inputs += [w, b]

    # features are blocked over the cluster-block grid axis; everything else is
    # a resident full-array block (constant index_map -> never re-DMA'd).
    in_specs = [pl.BlockSpec((CB, input_size), lambda i: (i, 0))]
    in_specs += [pl.BlockSpec(a.shape, lambda i: (0, 0)) for a in flat_inputs[1:]]

    out_shape = jax.ShapeDtypeStruct((c_pad * K, OUT_PAD), jnp.float32)
    out_spec = pl.BlockSpec((CB * K, OUT_PAD), lambda i: (i, 0))

    compute_dtype = w_glob.dtype
    scratch_shapes = [pltpu.VMEM((CB, H0), jnp.float32)]         # xh (global half)
    if len(rest) > 0:
        scratch_shapes.append(pltpu.VMEM((CB * K, H0), jnp.float32))  # assembled h

    kernel = _fused_kernel_factory(len(gp), len(rest), CB, K, compute_dtype)
    padded_out = pl.pallas_call(
        kernel,
        out_shape=out_shape,
        grid=(num_blocks,),
        in_specs=in_specs,
        out_specs=out_spec,
        scratch_shapes=scratch_shapes,
        compiler_params=pltpu.CompilerParams(
            dimension_semantics=("parallel",)),
    )(*flat_inputs)

    decoded = padded_out[: nb_clusters * K, :3]
    # TODO(synk): on v5e only, benchmark a 3-wide out_spec vs. this 128-lane slab.

    # cluster index vector: pure function of static config -> constant under jit.
    cluster = jnp.asarray(np.repeat(np.arange(nb_clusters, dtype=np.int32), K))
    return decoded, cluster


# ----------------------------------------------------------------------------
# Deterministic parameter init (PyTorch nn.Linear default: U(-1/sqrt(fan_in), ..))
# ----------------------------------------------------------------------------
def init_linear(key, fan_in, fan_out):
    kw, kb = jax.random.split(key)
    bound = 1.0 / math.sqrt(fan_in)
    w = jax.random.uniform(kw, (fan_in, fan_out), jnp.float32, -bound, bound)
    b = jax.random.uniform(kb, (fan_out,), jnp.float32, -bound, bound)
    return w, b


def build_params(key, input_size, nbs_features_global, nbs_features):
    global_params, point_params = [], []
    d = input_size
    for nb in nbs_features_global:
        key, sub = jax.random.split(key)
        global_params.append(init_linear(sub, d, nb))
        d = nb
    d += 2  # grid (x, y) concatenated
    for nb in nbs_features:
        key, sub = jax.random.split(key)
        point_params.append(init_linear(sub, d, nb))
        d = nb
    assert d == 3, "last layer of nbs_features must output 3 coordinates"
    return global_params, point_params


# ----------------------------------------------------------------------------
# Pure-JAX f32 reference (mirrors the PyTorch forward exactly)
# ----------------------------------------------------------------------------
def reference_forward(features, global_params, point_params, unit_grid,
                      nb_neighbors):
    x = features
    for w, b in global_params:
        x = jnp.maximum(x @ w + b, 0.0)
    nb_clusters = features.shape[0]
    x_rep = jnp.repeat(x, nb_neighbors, axis=0)
    grid_rep = jnp.tile(unit_grid, (nb_clusters, 1))
    y = jnp.concatenate([grid_rep, x_rep], axis=1)
    for i, (w, b) in enumerate(point_params):
        y = y @ w + b
        if i < len(point_params) - 1:
            y = jnp.maximum(y, 0.0)
        else:
            y = jnp.tanh(y)
    cluster = jnp.repeat(jnp.arange(nb_clusters, dtype=jnp.int32), nb_neighbors)
    return y, cluster


# ----------------------------------------------------------------------------
# Main
# ----------------------------------------------------------------------------
if __name__ == "__main__":
    # Module configuration (small but representative)
    input_size = 32
    nbs_features_global = [32, 16]
    nbs_features = [64, 16, 3]        # must end in 3
    nb_neighbors = 25                 # perfect square -> 5x5 grid
    nb_clusters = 16                  # -> 2 cluster blocks of 8 (dual-TC on v7x)

    key = jax.random.PRNGKey(0)
    key, pkey, fkey = jax.random.split(key, 3)

    global_params, point_params = build_params(
        pkey, input_size, nbs_features_global, nbs_features)
    unit_grid = create_grid(nb_neighbors)

    features = jax.random.normal(fkey, (nb_clusters, input_size), dtype=jnp.float32)

    prepared = prepare_decoder_params(global_params, point_params, unit_grid,
                                      use_bf16=True)

    decoded, cluster = grid_deformation_decoder_forward(features, prepared)
    decoded = jax.block_until_ready(decoded)
    cluster = jax.block_until_ready(cluster)

    # correctness vs. pure-JAX f32 reference (bf16 MXU operands -> ~2e-2 tol)
    ref_decoded, ref_cluster = reference_forward(
        features, global_params, point_params, unit_grid, nb_neighbors)
    assert decoded.shape == (nb_clusters * nb_neighbors, 3)
    assert cluster.shape == (nb_clusters * nb_neighbors,)
    assert np.allclose(np.asarray(decoded), np.asarray(ref_decoded),
                       rtol=2e-2, atol=2e-2)
    assert np.array_equal(np.asarray(cluster), np.asarray(ref_cluster))

    print("KERNEL_OK")
</pallas_src>

<mosaic_0001>
module attributes {stable_mosaic.version = 11 : i64} {
  func.func @kernel(%arg0: i32, %arg1: memref<8x32xf32, #tpu.memory_space<vmem>>, %arg2: memref<25x64xf32, #tpu.memory_space<vmem>>, %arg3: memref<32x32xbf16, #tpu.memory_space<vmem>>, %arg4: memref<1x32xf32, #tpu.memory_space<vmem>>, %arg5: memref<32x16xbf16, #tpu.memory_space<vmem>>, %arg6: memref<1x16xf32, #tpu.memory_space<vmem>>, %arg7: memref<16x64xbf16, #tpu.memory_space<vmem>>, %arg8: memref<64x16xbf16, #tpu.memory_space<vmem>>, %arg9: memref<1x16xf32, #tpu.memory_space<vmem>>, %arg10: memref<16x128xbf16, #tpu.memory_space<vmem>>, %arg11: memref<1x128xf32, #tpu.memory_space<vmem>>, %arg12: memref<200x128xf32, #tpu.memory_space<vmem>>, %arg13: memref<8x64xf32, #tpu.memory_space<vmem>>, %arg14: memref<200x64xf32, #tpu.memory_space<vmem>>) attributes {dimension_semantics = [#tpu.dimension_semantics<parallel>], iteration_bounds = array<i64: 2>, scalar_prefetch = 0 : i64, scratch_operands = 2 : i64, tpu.core_type = #tpu.core_type<tc>, window_params = [{transform_indices = @transform_0, window_bounds = array<i64: 8, 32>}, {pipeline_mode = #tpu.pipeline_mode<synchronous>, transform_indices = @transform_1, window_bounds = array<i64: 25, 64>}, {pipeline_mode = #tpu.pipeline_mode<synchronous>, transform_indices = @transform_2, window_bounds = array<i64: 32, 32>}, {pipeline_mode = #tpu.pipeline_mode<synchronous>, transform_indices = @transform_3, window_bounds = array<i64: 1, 32>}, {pipeline_mode = #tpu.pipeline_mode<synchronous>, transform_indices = @transform_4, window_bounds = array<i64: 32, 16>}, {pipeline_mode = #tpu.pipeline_mode<synchronous>, transform_indices = @transform_5, window_bounds = array<i64: 1, 16>}, {pipeline_mode = #tpu.pipeline_mode<synchronous>, transform_indices = @transform_6, window_bounds = array<i64: 16, 64>}, {pipeline_mode = #tpu.pipeline_mode<synchronous>, transform_indices = @transform_7, window_bounds = array<i64: 64, 16>}, {pipeline_mode = #tpu.pipeline_mode<synchronous>, transform_indices = @transform_8, window_bounds = array<i64: 1, 16>}, {pipeline_mode = #tpu.pipeline_mode<synchronous>, transform_indices = @transform_9, window_bounds = array<i64: 16, 128>}, {pipeline_mode = #tpu.pipeline_mode<synchronous>, transform_indices = @transform_10, window_bounds = array<i64: 1, 128>}, {transform_indices = @transform_11, window_bounds = array<i64: 200, 128>}]} {
    %c0 = arith.constant 0 : index
    %c0_0 = arith.constant 0 : index
    %0 = vector.load %arg1[%c0, %c0_0] : memref<8x32xf32, #tpu.memory_space<vmem>>, vector<8x32xf32>
    %c0_1 = arith.constant 0 : index
    %c0_2 = arith.constant 0 : index
    %1 = vector.load %arg3[%c0_1, %c0_2] : memref<32x32xbf16, #tpu.memory_space<vmem>>, vector<32x32xbf16>
    %c0_3 = arith.constant 0 : index
    %c0_4 = arith.constant 0 : index
    %2 = vector.load %arg4[%c0_3, %c0_4] : memref<1x32xf32, #tpu.memory_space<vmem>>, vector<1x32xf32>
    %3 = arith.truncf %0 : vector<8x32xf32> to vector<8x32xbf16>
    %cst = arith.constant dense<0.000000e+00> : vector<8x32xf32>
    %4 = tpu.matmul %3, %1, %cst {dimension_numbers = #tpu.dot_dimension_numbers<[1], [0], [0], [1], [0, 0, 1, 1], [], []>} : vector<8x32xbf16>, vector<32x32xbf16>, vector<8x32xf32> -> vector<8x32xf32>
    %5 = vector.broadcast %2 : vector<1x32xf32> to vector<8x32xf32>
    %6 = arith.addf %4, %5 : vector<8x32xf32>
    %cst_5 = arith.constant 0.000000e+00 : f32
    %7 = vector.broadcast %cst_5 : f32 to vector<8x32xf32>
    %8 = arith.maximumf %6, %7 : vector<8x32xf32>
    %c0_6 = arith.constant 0 : index
    %c0_7 = arith.constant 0 : index
    %9 = vector.load %arg5[%c0_6, %c0_7] : memref<32x16xbf16, #tpu.memory_space<vmem>>, vector<32x16xbf16>
    %c0_8 = arith.constant 0 : index
    %c0_9 = arith.constant 0 : index
    %10 = vector.load %arg6[%c0_8, %c0_9] : memref<1x16xf32, #tpu.memory_space<vmem>>, vector<1x16xf32>
    %11 = arith.truncf %8 : vector<8x32xf32> to vector<8x32xbf16>
    %cst_10 = arith.constant dense<0.000000e+00> : vector<8x16xf32>
    %12 = tpu.matmul %11, %9, %cst_10 {dimension_numbers = #tpu.dot_dimension_numbers<[1], [0], [0], [1], [0, 0, 1, 1], [], []>} : vector<8x32xbf16>, vector<32x16xbf16>, vector<8x16xf32> -> vector<8x16xf32>
    %13 = vector.broadcast %10 : vector<1x16xf32> to vector<8x16xf32>
    %14 = arith.addf %12, %13 : vector<8x16xf32>
    %cst_11 = arith.constant 0.000000e+00 : f32
    %15 = vector.broadcast %cst_11 : f32 to vector<8x16xf32>
    %16 = arith.maximumf %14, %15 : vector<8x16xf32>
    %c0_12 = arith.constant 0 : index
    %c0_13 = arith.constant 0 : index
    %17 = vector.load %arg7[%c0_12, %c0_13] : memref<16x64xbf16, #tpu.memory_space<vmem>>, vector<16x64xbf16>
    %18 = arith.truncf %16 : vector<8x16xf32> to vector<8x16xbf16>
    %cst_14 = arith.constant dense<0.000000e+00> : vector<8x64xf32>
    %19 = tpu.matmul %18, %17, %cst_14 {dimension_numbers = #tpu.dot_dimension_numbers<[1], [0], [0], [1], [0, 0, 1, 1], [], []>} : vector<8x16xbf16>, vector<16x64xbf16>, vector<8x64xf32> -> vector<8x64xf32>
    %c0_15 = arith.constant 0 : index
    %c0_16 = arith.constant 0 : index
    %20 = vector.load %arg13[%c0_15, %c0_16] : memref<8x64xf32, #tpu.memory_space<vmem>>, vector<8x64xf32>
    tpu.vector_store %arg13[%c0_15, %c0_16], %19 {strides = array<i32>} : memref<8x64xf32, #tpu.memory_space<vmem>>, vector<8x64xf32>,
    %c0_17 = arith.constant 0 : index
    %c0_18 = arith.constant 0 : index
    %21 = vector.load %arg2[%c0_17, %c0_18] : memref<25x64xf32, #tpu.memory_space<vmem>>, vector<25x64xf32>
    %c0_19 = arith.constant 0 : index
    %c0_20 = arith.constant 0 : index
    %22 = vector.load %arg13[%c0_19, %c0_20] : memref<8x64xf32, #tpu.memory_space<vmem>>, vector<1x64xf32>
    %23 = vector.broadcast %22 : vector<1x64xf32> to vector<25x64xf32>
    %24 = arith.addf %23, %21 : vector<25x64xf32>
    %cst_21 = arith.constant 0.000000e+00 : f32
    %25 = vector.broadcast %cst_21 : f32 to vector<25x64xf32>
    %26 = arith.maximumf %24, %25 : vector<25x64xf32>
    %c0_22 = arith.constant 0 : index
    %c0_23 = arith.constant 0 : index
    %27 = vector.load %arg14[%c0_22, %c0_23] : memref<200x64xf32, #tpu.memory_space<vmem>>, vector<25x64xf32>
    tpu.vector_store %arg14[%c0_22, %c0_23], %26 {strides = array<i32>} : memref<200x64xf32, #tpu.memory_space<vmem>>, vector<25x64xf32>,
    %c1 = arith.constant 1 : index
    %c0_24 = arith.constant 0 : index
    %28 = vector.load %arg13[%c1, %c0_24] : memref<8x64xf32, #tpu.memory_space<vmem>>, vector<1x64xf32>
    %29 = vector.broadcast %28 : vector<1x64xf32> to vector<25x64xf32>
    %30 = arith.addf %29, %21 : vector<25x64xf32>
    %cst_25 = arith.constant 0.000000e+00 : f32
    %31 = vector.broadcast %cst_25 : f32 to vector<25x64xf32>
    %32 = arith.maximumf %30, %31 : vector<25x64xf32>
    %c25 = arith.constant 25 : index
    %c0_26 = arith.constant 0 : index
    %33 = vector.load %arg14[%c25, %c0_26] : memref<200x64xf32, #tpu.memory_space<vmem>>, vector<25x64xf32>
    tpu.vector_store %arg14[%c25, %c0_26], %32 {strides = array<i32>} : memref<200x64xf32, #tpu.memory_space<vmem>>, vector<25x64xf32>,
    %c2 = arith.constant 2 : index
    %c0_27 = arith.constant 0 : index
    %34 = vector.load %arg13[%c2, %c0_27] : memref<8x64xf32, #tpu.memory_space<vmem>>, vector<1x64xf32>
    %35 = vector.broadcast %34 : vector<1x64xf32> to vector<25x64xf32>
    %36 = arith.addf %35, %21 : vector<25x64xf32>
    %cst_28 = arith.constant 0.000000e+00 : f32
    %37 = vector.broadcast %cst_28 : f32 to vector<25x64xf32>
    %38 = arith.maximumf %36, %37 : vector<25x64xf32>
    %c50 = arith.constant 50 : index
    %c0_29 = arith.constant 0 : index
    %39 = vector.load %arg14[%c50, %c0_29] : memref<200x64xf32, #tpu.memory_space<vmem>>, vector<25x64xf32>
    tpu.vector_store %arg14[%c50, %c0_29], %38 {strides = array<i32>} : memref<200x64xf32, #tpu.memory_space<vmem>>, vector<25x64xf32>,
    %c3 = arith.constant 3 : index
    %c0_30 = arith.constant 0 : index
    %40 = vector.load %arg13[%c3, %c0_30] : memref<8x64xf32, #tpu.memory_space<vmem>>, vector<1x64xf32>
    %41 = vector.broadcast %40 : vector<1x64xf32> to vector<25x64xf32>
    %42 = arith.addf %41, %21 : vector<25x64xf32>
    %cst_31 = arith.constant 0.000000e+00 : f32
    %43 = vector.broadcast %cst_31 : f32 to vector<25x64xf32>
    %44 = arith.maximumf %42, %43 : vector<25x64xf32>
    %c75 = arith.constant 75 : index
    %c0_32 = arith.constant 0 : index
    %45 = vector.load %arg14[%c75, %c0_32] : memref<200x64xf32, #tpu.memory_space<vmem>>, vector<25x64xf32>
    tpu.vector_store %arg14[%c75, %c0_32], %44 {strides = array<i32>} : memref<200x64xf32, #tpu.memory_space<vmem>>, vector<25x64xf32>,
    %c4 = arith.constant 4 : index
    %c0_33 = arith.constant 0 : index
    %46 = vector.load %arg13[%c4, %c0_33] : memref<8x64xf32, #tpu.memory_space<vmem>>, vector<1x64xf32>
    %47 = vector.broadcast %46 : vector<1x64xf32> to vector<25x64xf32>
    %48 = arith.addf %47, %21 : vector<25x64xf32>
    %cst_34 = arith.constant 0.000000e+00 : f32
    %49 = vector.broadcast %cst_34 : f32 to vector<25x64xf32>
    %50 = arith.maximumf %48, %49 : vector<25x64xf32>
    %c100 = arith.constant 100 : index
    %c0_35 = arith.constant 0 : index
    %51 = vector.load %arg14[%c100, %c0_35] : memref<200x64xf32, #tpu.memory_space<vmem>>, vector<25x64xf32>
    tpu.vector_store %arg14[%c100, %c0_35], %50 {strides = array<i32>} : memref<200x64xf32, #tpu.memory_space<vmem>>, vector<25x64xf32>,
    %c5 = arith.constant 5 : index
    %c0_36 = arith.constant 0 : index
    %52 = vector.load %arg13[%c5, %c0_36] : memref<8x64xf32, #tpu.memory_space<vmem>>, vector<1x64xf32>
    %53 = vector.broadcast %52 : vector<1x64xf32> to vector<25x64xf32>
    %54 = arith.addf %53, %21 : vector<25x64xf32>
    %cst_37 = arith.constant 0.000000e+00 : f32
    %55 = vector.broadcast %cst_37 : f32 to vector<25x64xf32>
    %56 = arith.maximumf %54, %55 : vector<25x64xf32>
    %c125 = arith.constant 125 : index
    %c0_38 = arith.constant 0 : index
    %57 = vector.load %arg14[%c125, %c0_38] : memref<200x64xf32, #tpu.memory_space<vmem>>, vector<25x64xf32>
    tpu.vector_store %arg14[%c125, %c0_38], %56 {strides = array<i32>} : memref<200x64xf32, #tpu.memory_space<vmem>>, vector<25x64xf32>,
    %c6 = arith.constant 6 : index
    %c0_39 = arith.constant 0 : index
    %58 = vector.load %arg13[%c6, %c0_39] : memref<8x64xf32, #tpu.memory_space<vmem>>, vector<1x64xf32>
    %59 = vector.broadcast %58 : vector<1x64xf32> to vector<25x64xf32>
    %60 = arith.addf %59, %21 : vector<25x64xf32>
    %cst_40 = arith.constant 0.000000e+00 : f32
    %61 = vector.broadcast %cst_40 : f32 to vector<25x64xf32>
    %62 = arith.maximumf %60, %61 : vector<25x64xf32>
    %c150 = arith.constant 150 : index
    %c0_41 = arith.constant 0 : index
    %63 = vector.load %arg14[%c150, %c0_41] : memref<200x64xf32, #tpu.memory_space<vmem>>, vector<25x64xf32>
    tpu.vector_store %arg14[%c150, %c0_41], %62 {strides = array<i32>} : memref<200x64xf32, #tpu.memory_space<vmem>>, vector<25x64xf32>,
    %c7 = arith.constant 7 : index
    %c0_42 = arith.constant 0 : index
    %64 = vector.load %arg13[%c7, %c0_42] : memref<8x64xf32, #tpu.memory_space<vmem>>, vector<1x64xf32>
    %65 = vector.broadcast %64 : vector<1x64xf32> to vector<25x64xf32>
    %66 = arith.addf %65, %21 : vector<25x64xf32>
    %cst_43 = arith.constant 0.000000e+00 : f32
    %67 = vector.broadcast %cst_43 : f32 to vector<25x64xf32>
    %68 = arith.maximumf %66, %67 : vector<25x64xf32>
    %c175 = arith.constant 175 : index
    %c0_44 = arith.constant 0 : index
    %69 = vector.load %arg14[%c175, %c0_44] : memref<200x64xf32, #tpu.memory_space<vmem>>, vector<25x64xf32>
    tpu.vector_store %arg14[%c175, %c0_44], %68 {strides = array<i32>} : memref<200x64xf32, #tpu.memory_space<vmem>>, vector<25x64xf32>,
    %c0_45 = arith.constant 0 : index
    %c0_46 = arith.constant 0 : index
    %70 = vector.load %arg14[%c0_45, %c0_46] : memref<200x64xf32, #tpu.memory_space<vmem>>, vector<200x64xf32>
    %c0_47 = arith.constant 0 : index
    %c0_48 = arith.constant 0 : index
    %71 = vector.load %arg8[%c0_47, %c0_48] : memref<64x16xbf16, #tpu.memory_space<vmem>>, vector<64x16xbf16>
    %c0_49 = arith.constant 0 : index
    %c0_50 = arith.constant 0 : index
    %72 = vector.load %arg9[%c0_49, %c0_50] : memref<1x16xf32, #tpu.memory_space<vmem>>, vector<1x16xf32>
    %73 = arith.truncf %70 : vector<200x64xf32> to vector<200x64xbf16>
    %cst_51 = arith.constant dense<0.000000e+00> : vector<200x16xf32>
    %74 = tpu.matmul %73, %71, %cst_51 {dimension_numbers = #tpu.dot_dimension_numbers<[1], [0], [0], [1], [0, 0, 1, 1], [], []>} : vector<200x64xbf16>, vector<64x16xbf16>, vector<200x16xf32> -> vector<200x16xf32>
    %75 = vector.broadcast %72 : vector<1x16xf32> to vector<200x16xf32>
    %76 = arith.addf %74, %75 : vector<200x16xf32>
    %cst_52 = arith.constant 0.000000e+00 : f32
    %77 = vector.broadcast %cst_52 : f32 to vector<200x16xf32>
    %78 = arith.maximumf %76, %77 : vector<200x16xf32>
    %c0_53 = arith.constant 0 : index
    %c0_54 = arith.constant 0 : index
    %79 = vector.load %arg10[%c0_53, %c0_54] : memref<16x128xbf16, #tpu.memory_space<vmem>>, vector<16x128xbf16>
    %c0_55 = arith.constant 0 : index
    %c0_56 = arith.constant 0 : index
    %80 = vector.load %arg11[%c0_55, %c0_56] : memref<1x128xf32, #tpu.memory_space<vmem>>, vector<1x128xf32>
    %81 = arith.truncf %78 : vector<200x16xf32> to vector<200x16xbf16>
    %cst_57 = arith.constant dense<0.000000e+00> : vector<200x128xf32>
    %82 = tpu.matmul %81, %79, %cst_57 {dimension_numbers = #tpu.dot_dimension_numbers<[1], [0], [0], [1], [0, 0, 1, 1], [], []>} : vector<200x16xbf16>, vector<16x128xbf16>, vector<200x128xf32> -> vector<200x128xf32>
    %83 = vector.broadcast %80 : vector<1x128xf32> to vector<200x128xf32>
    %84 = arith.addf %82, %83 : vector<200x128xf32>
    %85 = math.tanh %84 : vector<200x128xf32>
    %c0_58 = arith.constant 0 : index
    %c0_59 = arith.constant 0 : index
    %86 = vector.load %arg12[%c0_58, %c0_59] : memref<200x128xf32, #tpu.memory_space<vmem>>, vector<200x128xf32>
    tpu.vector_store %arg12[%c0_58, %c0_59], %85 {strides = array<i32>} : memref<200x128xf32, #tpu.memory_space<vmem>>, vector<200x128xf32>,
    return
  }
  func.func @transform_0(%arg0: i32) -> (i32, i32) {
    %c0_i32 = arith.constant 0 : i32
    %c0_i32_0 = arith.constant 0 : i32
    return %arg0, %c0_i32 : i32, i32
  }
  func.func @transform_1(%arg0: i32) -> (i32, i32) {
    %c0_i32 = arith.constant 0 : i32
    %c0_i32_0 = arith.constant 0 : i32
    %c0_i32_1 = arith.constant 0 : i32
    return %c0_i32, %c0_i32_0 : i32, i32
  }
  func.func @transform_2(%arg0: i32) -> (i32, i32) {
    %c0_i32 = arith.constant 0 : i32
    %c0_i32_0 = arith.constant 0 : i32
    %c0_i32_1 = arith.constant 0 : i32
    return %c0_i32, %c0_i32_0 : i32, i32
  }
  func.func @transform_3(%arg0: i32) -> (i32, i32) {
    %c0_i32 = arith.constant 0 : i32
    %c0_i32_0 = arith.constant 0 : i32
    %c0_i32_1 = arith.constant 0 : i32
    return %c0_i32, %c0_i32_0 : i32, i32
  }
  func.func @transform_4(%arg0: i32) -> (i32, i32) {
    %c0_i32 = arith.constant 0 : i32
    %c0_i32_0 = arith.constant 0 : i32
    %c0_i32_1 = arith.constant 0 : i32
    return %c0_i32, %c0_i32_0 : i32, i32
  }
  func.func @transform_5(%arg0: i32) -> (i32, i32) {
    %c0_i32 = arith.constant 0 : i32
    %c0_i32_0 = arith.constant 0 : i32
    %c0_i32_1 = arith.constant 0 : i32
    return %c0_i32, %c0_i32_0 : i32, i32
  }
  func.func @transform_6(%arg0: i32) -> (i32, i32) {
    %c0_i32 = arith.constant 0 : i32
    %c0_i32_0 = arith.constant 0 : i32
    %c0_i32_1 = arith.constant 0 : i32
    return %c0_i32, %c0_i32_0 : i32, i32
  }
  func.func @transform_7(%arg0: i32) -> (i32, i32) {
    %c0_i32 = arith.constant 0 : i32
    %c0_i32_0 = arith.constant 0 : i32
    %c0_i32_1 = arith.constant 0 : i32
    return %c0_i32, %c0_i32_0 : i32, i32
  }
  func.func @transform_8(%arg0: i32) -> (i32, i32) {
    %c0_i32 = arith.constant 0 : i32
    %c0_i32_0 = arith.constant 0 : i32
    %c0_i32_1 = arith.constant 0 : i32
    return %c0_i32, %c0_i32_0 : i32, i32
  }
  func.func @transform_9(%arg0: i32) -> (i32, i32) {
    %c0_i32 = arith.constant 0 : i32
    %c0_i32_0 = arith.constant 0 : i32
    %c0_i32_1 = arith.constant 0 : i32
    return %c0_i32, %c0_i32_0 : i32, i32
  }
  func.func @transform_10(%arg0: i32) -> (i32, i32) {
    %c0_i32 = arith.constant 0 : i32
    %c0_i32_0 = arith.constant 0 : i32
    %c0_i32_1 = arith.constant 0 : i32
    return %c0_i32, %c0_i32_0 : i32, i32
  }
  func.func @transform_11(%arg0: i32) -> (i32, i32) {
    %c0_i32 = arith.constant 0 : i32
    %c0_i32_0 = arith.constant 0 : i32
    return %arg0, %c0_i32 : i32, i32
  }
}

</mosaic_0001>

<llo_original>
// kernel: grid_deformation_decoder_forward.1
$region0: #{grid_deformation_decoder_forward.1}
  #allocation0 [shape = 'u32[]', space=smem, size = 0x4, offset = 0x4, fixed_abs, tag = 'smem constant byte address 0x4 - core index']
  #allocation1 [shape = 'u32[144,128]{1,0:T(1,128)}', space=vmem, size = 0x12000, scoped, tag = 'internal scratch']
  #allocation2 [shape = 'f32[8,64]{1,0:T(8,128)}', space=vmem, size = 0x1000, scoped, tag = 'scratch operand']
  #allocation3 [shape = 'f32[200,64]{1,0:T(8,128)}', space=vmem, size = 0x19000, scoped, tag = 'scratch operand']
  %s0 = inlined_call_operand.vmem [shape: f32[16,32], index: 0, kind: input, shape index: {}]
  %s1 = inlined_call_operand.vmem [shape: f32[25,64], index: 1, kind: input, shape index: {}]
  %s2 = inlined_call_operand.vmem [shape: bf16[32,32], index: 2, kind: input, shape index: {}]
  %s3 = inlined_call_operand.vmem [shape: f32[1,32], index: 3, kind: input, shape index: {}]
  %s4 = inlined_call_operand.vmem [shape: bf16[32,16], index: 4, kind: input, shape index: {}]
  %s5 = inlined_call_operand.vmem [shape: f32[1,16], index: 5, kind: input, shape index: {}]
  %s6 = inlined_call_operand.vmem [shape: bf16[16,64], index: 6, kind: input, shape index: {}]
  %s7 = inlined_call_operand.vmem [shape: bf16[64,16], index: 7, kind: input, shape index: {}]
  %s8 = inlined_call_operand.hbm [shape: f32[1,16], index: 8, kind: input, shape index: {}]
  %s9 = inlined_call_operand.hbm [shape: bf16[16,128], index: 9, kind: input, shape index: {}]
  %s10 = inlined_call_operand.hbm [shape: f32[1,128], index: 10, kind: input, shape index: {}]
  %s11 = inlined_call_operand.vmem [shape: f32[400,128], index: 11, kind: output, shape index: {}]
  %s12 = sld [smem:[#allocation0]]
  $region89: #{grid_deformation_decoder_forward.1} parent=0
    _
  %s14 = ssub.s32 1, %s12
  %s15 = scalar_select 0, %s14, %s12
  $region1: #{grid_deformation_decoder_forward.1} parent=0
    #allocation4 [shape = 'u8[512]{0}', space=vmem, size = 0x400, scoped, tag = 'input window, operand 8, single buffered']
    #allocation5 [shape = 's32[2]{0}', space=sflag, size = 0x8, scoped, tag = 'scoped memory for grid_deformation_decoder_forward.1']
    #allocation6 [shape = 'u8[4096]{0}', space=vmem, size = 0x1000, scoped, tag = 'input window, operand 9, single buffered']
    #allocation7 [shape = 's32[1]{0}', space=sflag, size = 0x4, scoped, tag = 'scoped memory for grid_deformation_decoder_forward.1']
    #allocation8 [shape = 'u8[512]{0}', space=vmem, size = 0x400, scoped, tag = 'input window, operand 10, single buffered']
    %16 = vsyncpa [#allocation5], 0
    %17 = vsyncpa [#allocation7], 0
    loop: start=0, step=1, limit=4
    $region2: #{grid_deformation_decoder_forward.1} parent=1 // loop_pre_header
      _
    $region3: #{grid_deformation_decoder_forward.1} parent=1 // loop_header
      %s19 = sphi 0, %s23
      %p20 = scmp.ge.s32.totalorder %s19, 4
      %s29 = sphi 0, %s31
      %s32 = sphi 0, %s29
      %s33 = sphi 0, %s32
      %s49 = sphi 0, %s33
      %s53 = sphi 0, %s53
      %s55 = sphi 0, %s53
      %s56 = sphi 0, %s55
      %s70 = sphi 0, %s56
      %s74 = sphi 0, %s74
      %s76 = sphi 0, %s74
      %s77 = sphi 0, %s76
      %s91 = sphi 0, %s77
      %s95 = sphi 0, %s95
      %s97 = sphi 0, %s95
      %s98 = sphi 0, %s97
      %s112 = sphi 0, %s98
      %s116 = sphi 0, %s116
      %s118 = sphi 0, %s116
      %s119 = sphi 0, %s118
      %s133 = sphi 0, %s119
      %s137 = sphi 0, %s137
      %s139 = sphi 0, %s137
      %s140 = sphi 0, %s139
      %s154 = sphi 0, %s140
      %s158 = sphi 0, %s158
      %s160 = sphi 0, %s158
      %s161 = sphi 0, %s160
      %s175 = sphi 0, %s161
      %s179 = sphi 0, %s179
      %s181 = sphi 0, %s179
      %s182 = sphi 0, %s181
      %s196 = sphi 0, %s182
      %s200 = sphi 0, %s200
      %s202 = sphi 0, %s200
      %s203 = sphi 0, %s202
      %s217 = sphi 0, %s203
      %s221 = sphi 0, %s221
      %s223 = sphi 0, %s221
      %s224 = sphi 0, %s223
      %s238 = sphi 0, %s224
      %s242 = sphi 0, %s242
      %s244 = sphi 0, %s242
      %s245 = sphi 0, %s244
      %s259 = sphi 0, %s245
      %s265 = sphi 0, %s267
      %s268 = sphi 0, %s265
      %s269 = sphi 0, %s268
      %s285 = sphi 0, %s269
    $region4: #{grid_deformation_decoder_forward.1} parent=1 // loop_header_branch
      %22 = sbr.rel (%p20) target = $region8
    $region5: #{grid_deformation_decoder_forward.1} parent=1 // loop_body
      %s24 = ssub.s32 %s19, 1
      %s25 = ssub.s32 %s19, 2
      %s26 = sadd.s32 %s19, 1
      %s27 = ssub.s32 %s19, %s26
      %p28 = scmp.eq.s32.totalorder %s27, 0
      %s30 = sadd.s32 %s29, 1
      %s31 = scalar_select %p28, %s29, %s30
      %p34 = pneg %p28
      %p35 = scmp.eq.s32.totalorder %s19, 1
      %p36 = por %p34, %p35
      %p37 = scmp.ne.s32.totalorder %s29, %s32
      %p38 = scmp.eq.s32.totalorder %s19, 0
      %p39 = por %p37, %p38
      %p40 = scmp.ne.s32.totalorder %s29, %s32
      %p41 = scmp.eq.s32.totalorder %s24, 1
      %p42 = por %p40, %p41
      %p43 = scmp.ne.s32.totalorder %s32, %s33
      %p44 = scmp.eq.s32.totalorder %s24, 0
      %p45 = por %p43, %p44
      %p46 = scmp.ne.s32.totalorder %s32, %s33
      %p47 = scmp.eq.s32.totalorder %s25, 1
      %p48 = por %p46, %p47
      %p50 = scmp.ne.s32.totalorder %s33, %s49
      %p51 = scmp.eq.s32.totalorder %s25, 0
      %p52 = por %p50, %p51
      %s54 = sadd.s32 %s53, 1
      %p57 = scmp.eq.s32.totalorder %s19, 1
      %p58 = scmp.ne.s32.totalorder %s53, %s55
      %p59 = scmp.eq.s32.totalorder %s19, 0
      %p60 = por %p58, %p59
      %p61 = scmp.ne.s32.totalorder %s53, %s55
      %p62 = scmp.eq.s32.totalorder %s24, 1
      %p63 = por %p61, %p62
      %p64 = scmp.ne.s32.totalorder %s55, %s56
      %p65 = scmp.eq.s32.totalorder %s24, 0
      %p66 = por %p64, %p65
      %p67 = scmp.ne.s32.totalorder %s55, %s56
      %p68 = scmp.eq.s32.totalorder %s25, 1
      %p69 = por %p67, %p68
      %p71 = scmp.ne.s32.totalorder %s56, %s70
      %p72 = scmp.eq.s32.totalorder %s25, 0
      %p73 = por %p71, %p72
      %s75 = sadd.s32 %s74, 1
      %p78 = scmp.eq.s32.totalorder %s19, 1
      %p79 = scmp.ne.s32.totalorder %s74, %s76
      %p80 = scmp.eq.s32.totalorder %s19, 0
      %p81 = por %p79, %p80
      %p82 = scmp.ne.s32.totalorder %s74, %s76
      %p83 = scmp.eq.s32.totalorder %s24, 1
      %p84 = por %p82, %p83
      %p85 = scmp.ne.s32.totalorder %s76, %s77
      %p86 = scmp.eq.s32.totalorder %s24, 0
      %p87 = por %p85, %p86
      %p88 = scmp.ne.s32.totalorder %s76, %s77
      %p89 = scmp.eq.s32.totalorder %s25, 1
      %p90 = por %p88, %p89
      %p92 = scmp.ne.s32.totalorder %s77, %s91
      %p93 = scmp.eq.s32.totalorder %s25, 0
      %p94 = por %p92, %p93
      %s96 = sadd.s32 %s95, 1
      %p99 = scmp.eq.s32.totalorder %s19, 1
      %p100 = scmp.ne.s32.totalorder %s95, %s97
      %p101 = scmp.eq.s32.totalorder %s19, 0
      %p102 = por %p100, %p101
      %p103 = scmp.ne.s32.totalorder %s95, %s97
      %p104 = scmp.eq.s32.totalorder %s24, 1
      %p105 = por %p103, %p104
      %p106 = scmp.ne.s32.totalorder %s97, %s98
      %p107 = scmp.eq.s32.totalorder %s24, 0
      %p108 = por %p106, %p107
      %p109 = scmp.ne.s32.totalorder %s97, %s98
      %p110 = scmp.eq.s32.totalorder %s25, 1
      %p111 = por %p109, %p110
      %p113 = scmp.ne.s32.totalorder %s98, %s112
      %p114 = scmp.eq.s32.totalorder %s25, 0
      %p115 = por %p113, %p114
      %s117 = sadd.s32 %s116, 1
      %p120 = scmp.eq.s32.totalorder %s19, 1
      %p121 = scmp.ne.s32.totalorder %s116, %s118
      %p122 = scmp.eq.s32.totalorder %s19, 0
      %p123 = por %p121, %p122
      %p124 = scmp.ne.s32.totalorder %s116, %s118
      %p125 = scmp.eq.s32.totalorder %s24, 1
      %p126 = por %p124, %p125
      %p127 = scmp.ne.s32.totalorder %s118, %s119
      %p128 = scmp.eq.s32.totalorder %s24, 0
      %p129 = por %p127, %p128
      %p130 = scmp.ne.s32.totalorder %s118, %s119
      %p131 = scmp.eq.s32.totalorder %s25, 1
      %p132 = por %p130, %p131
      %p134 = scmp.ne.s32.totalorder %s119, %s133
      %p135 = scmp.eq.s32.totalorder %s25, 0
      %p136 = por %p134, %p135
      %s138 = sadd.s32 %s137, 1
      %p141 = scmp.eq.s32.totalorder %s19, 1
      %p142 = scmp.ne.s32.totalorder %s137, %s139
      %p143 = scmp.eq.s32.totalorder %s19, 0
      %p144 = por %p142, %p143
      %p145 = scmp.ne.s32.totalorder %s137, %s139
      %p146 = scmp.eq.s32.totalorder %s24, 1
      %p147 = por %p145, %p146
      %p148 = scmp.ne.s32.totalorder %s139, %s140
      %p149 = scmp.eq.s32.totalorder %s24, 0
      %p150 = por %p148, %p149
      %p151 = scmp.ne.s32.totalorder %s139, %s140
      %p152 = scmp.eq.s32.totalorder %s25, 1
      %p153 = por %p151, %p152
      %p155 = scmp.ne.s32.totalorder %s140, %s154
      %p156 = scmp.eq.s32.totalorder %s25, 0
      %p157 = por %p155, %p156
      %s159 = sadd.s32 %s158, 1
      %p162 = scmp.eq.s32.totalorder %s19, 1
      %p163 = scmp.ne.s32.totalorder %s158, %s160
      %p164 = scmp.eq.s32.totalorder %s19, 0
      %p165 = por %p163, %p164
      %p166 = scmp.ne.s32.totalorder %s158, %s160
      %p167 = scmp.eq.s32.totalorder %s24, 1
      %p168 = por %p166, %p167
      %p169 = scmp.ne.s32.totalorder %s160, %s161
      %p170 = scmp.eq.s32.totalorder %s24, 0
      %p171 = por %p169, %p170
      %p172 = scmp.ne.s32.totalorder %s160, %s161
      %p173 = scmp.eq.s32.totalorder %s25, 1
      %p174 = por %p172, %p173
      %p176 = scmp.ne.s32.totalorder %s161, %s175
      %p177 = scmp.eq.s32.totalorder %s25, 0
      %p178 = por %p176, %p177
      %s180 = sadd.s32 %s179, 1
      %p183 = scmp.eq.s32.totalorder %s19, 1
      %p184 = scmp.ne.s32.totalorder %s179, %s181
      %p185 = scmp.eq.s32.totalorder %s19, 0
      %p186 = por %p184, %p185
      %p187 = scmp.ne.s32.totalorder %s179, %s181
      %p188 = scmp.eq.s32.totalorder %s24, 1
      %p189 = por %p187, %p188
      %p190 = scmp.ne.s32.totalorder %s181, %s182
      %p191 = scmp.eq.s32.totalorder %s24, 0
      %p192 = por %p190, %p191
      %p193 = scmp.ne.s32.totalorder %s181, %s182
      %p194 = scmp.eq.s32.totalorder %s25, 1
      %p195 = por %p193, %p194
      %p197 = scmp.ne.s32.totalorder %s182, %s196
      %p198 = scmp.eq.s32.totalorder %s25, 0
      %p199 = por %p197, %p198
      %s201 = sadd.s32 %s200, 1
      %p204 = scmp.eq.s32.totalorder %s19, 1
      %p205 = scmp.ne.s32.totalorder %s200, %s202
      %p206 = scmp.eq.s32.totalorder %s19, 0
      %p207 = por %p205, %p206
      %p208 = scmp.ne.s32.totalorder %s200, %s202
      %p209 = scmp.eq.s32.totalorder %s24, 1
      %p210 = por %p208, %p209
      %p211 = scmp.ne.s32.totalorder %s202, %s203
      %p212 = scmp.eq.s32.totalorder %s24, 0
      %p213 = por %p211, %p212
      %p214 = scmp.ne.s32.totalorder %s202, %s203
      %p215 = scmp.eq.s32.totalorder %s25, 1
      %p216 = por %p214, %p215
      %p218 = scmp.ne.s32.totalorder %s203, %s217
      %p219 = scmp.eq.s32.totalorder %s25, 0
      %p220 = por %p218, %p219
      %s222 = sadd.s32 %s221, 1
      %p225 = scmp.eq.s32.totalorder %s19, 1
      %p226 = scmp.ne.s32.totalorder %s221, %s223
      %p227 = scmp.eq.s32.totalorder %s19, 0
      %p228 = por %p226, %p227
      %p229 = scmp.ne.s32.totalorder %s221, %s223
      %p230 = scmp.eq.s32.totalorder %s24, 1
      %p231 = por %p229, %p230
      %p232 = scmp.ne.s32.totalorder %s223, %s224
      %p233 = scmp.eq.s32.totalorder %s24, 0
      %p234 = por %p232, %p233
      %p235 = scmp.ne.s32.totalorder %s223, %s224
      %p236 = scmp.eq.s32.totalorder %s25, 1
      %p237 = por %p235, %p236
      %p239 = scmp.ne.s32.totalorder %s224, %s238
      %p240 = scmp.eq.s32.totalorder %s25, 0
      %p241 = por %p239, %p240
      %s243 = sadd.s32 %s242, 1
      %p246 = scmp.eq.s32.totalorder %s19, 1
      %p247 = scmp.ne.s32.totalorder %s242, %s244
      %p248 = scmp.eq.s32.totalorder %s19, 0
      %p249 = por %p247, %p248
      %p250 = scmp.ne.s32.totalorder %s242, %s244
      %p251 = scmp.eq.s32.totalorder %s24, 1
      %p252 = por %p250, %p251
      %p253 = scmp.ne.s32.totalorder %s244, %s245
      %p254 = scmp.eq.s32.totalorder %s24, 0
      %p255 = por %p253, %p254
      %p256 = scmp.ne.s32.totalorder %s244, %s245
      %p257 = scmp.eq.s32.totalorder %s25, 1
      %p258 = por %p256, %p257
      %p260 = scmp.ne.s32.totalorder %s245, %s259
      %p261 = scmp.eq.s32.totalorder %s25, 0
      %p262 = por %p260, %p261
      %s263 = ssub.s32 %s19, %s26
      %p264 = scmp.eq.s32.totalorder %s263, 0
      %s266 = sadd.s32 %s265, 1
      %s267 = scalar_select %p264, %s265, %s266
      %p270 = pneg %p264
      %p271 = scmp.eq.s32.totalorder %s19, 1
      %p272 = por %p270, %p271
      %p273 = scmp.ne.s32.totalorder %s265, %s268
      %p274 = scmp.eq.s32.totalorder %s19, 0
      %p275 = por %p273, %p274
      %p276 = scmp.ne.s32.totalorder %s265, %s268
      %p277 = scmp.eq.s32.totalorder %s24, 1
      %p278 = por %p276, %p277
      %p279 = scmp.ne.s32.totalorder %s268, %s269
      %p280 = scmp.eq.s32.totalorder %s24, 0
      %p281 = por %p279, %p280
      %p282 = scmp.ne.s32.totalorder %s268, %s269
      %p283 = scmp.eq.s32.totalorder %s25, 1
      %p284 = por %p282, %p283
      %p286 = scmp.ne.s32.totalorder %s269, %s285
      %p287 = scmp.eq.s32.totalorder %s25, 0
      %p288 = por %p286, %p287
      %p289 = scmp.le.s32.totalorder 1, %s19
      %p290 = scmp.lt.s32.totalorder %s19, 3
      %p291 = pnand %p289, %p290
      %p292 = pneg %p291
      // Predicated region
      $region9: #{grid_deformation_decoder_forward.1} parent=5 // pred_check
        _
      $region10: #{grid_deformation_decoder_forward.1} parent=5 // pred_check_branch
        %294 = sbr.rel (%p291) target = $region12
      $region11: #{grid_deformation_decoder_forward.1} parent=5 // pred_region
        %s295 = ssub.s32 %s19, 1
        // Predicated region
        $region13: #{grid_deformation_decoder_forward.1} parent=11 // pred_check
          %p296 = pneg %p66
        $region14: #{grid_deformation_decoder_forward.1} parent=11 // pred_check_branch
          %298 = sbr.rel (%p296) target = $region16
        $region15: #{grid_deformation_decoder_forward.1} parent=11 // pred_region
          _
        $region16: #{grid_deformation_decoder_forward.1} parent=11 // pred_fallthru
          _
        // Predicated region
        $region17: #{grid_deformation_decoder_forward.1} parent=11 // pred_check
          %p299 = pneg %p87
        $region18: #{grid_deformation_decoder_forward.1} parent=11 // pred_check_branch
          %301 = sbr.rel (%p299) target = $region20
        $region19: #{grid_deformation_decoder_forward.1} parent=11 // pred_region
          _
        $region20: #{grid_deformation_decoder_forward.1} parent=11 // pred_fallthru
          _
        // Predicated region
        $region21: #{grid_deformation_decoder_forward.1} parent=11 // pred_check
          %p302 = pneg %p108
        $region22: #{grid_deformation_decoder_forward.1} parent=11 // pred_check_branch
          %304 = sbr.rel (%p302) target = $region24
        $region23: #{grid_deformation_decoder_forward.1} parent=11 // pred_region
          _
        $region24: #{grid_deformation_decoder_forward.1} parent=11 // pred_fallthru
          _
        // Predicated region
        $region25: #{grid_deformation_decoder_forward.1} parent=11 // pred_check
          %p305 = pneg %p129
        $region26: #{grid_deformation_decoder_forward.1} parent=11 // pred_check_branch
          %307 = sbr.rel (%p305) target = $region28
        $region27: #{grid_deformation_decoder_forward.1} parent=11 // pred_region
          _
        $region28: #{grid_deformation_decoder_forward.1} parent=11 // pred_fallthru
          _
        // Predicated region
        $region29: #{grid_deformation_decoder_forward.1} parent=11 // pred_check
          %p308 = pneg %p150
        $region30: #{grid_deformation_decoder_forward.1} parent=11 // pred_check_branch
          %310 = sbr.rel (%p308) target = $region32
        $region31: #{grid_deformation_decoder_forward.1} parent=11 // pred_region
          _
        $region32: #{grid_deformation_decoder_forward.1} parent=11 // pred_fallthru
          _
        // Predicated region
        $region33: #{grid_deformation_decoder_forward.1} parent=11 // pred_check
          %p311 = pneg %p171
        $region34: #{grid_deformation_decoder_forward.1} parent=11 // pred_check_branch
          %313 = sbr.rel (%p311) target = $region36
        $region35: #{grid_deformation_decoder_forward.1} parent=11 // pred_region
          _
        $region36: #{grid_deformation_decoder_forward.1} parent=11 // pred_fallthru
          _
        // Predicated region
        $region37: #{grid_deformation_decoder_forward.1} parent=11 // pred_check
          %p314 = pneg %p192
        $region38: #{grid_deformation_decoder_forward.1} parent=11 // pred_check_branch
          %316 = sbr.rel (%p314) target = $region40
        $region39: #{grid_deformation_decoder_forward.1} parent=11 // pred_region
          _
        $region40: #{grid_deformation_decoder_forward.1} parent=11 // pred_fallthru
          _
        // Predicated region
        $region41: #{grid_deformation_decoder_forward.1} parent=11 // pred_check
          %p317 = pneg %p213
        $region42: #{grid_deformation_decoder_forward.1} parent=11 // pred_check_branch
          %319 = sbr.rel (%p317) target = $region44
        $region43: #{grid_deformation_decoder_forward.1} parent=11 // pred_region
          %s321 = ssub.s32 16, 16
          %322 = vsyncadd [#allocation5], %s321
          %s324 = sshll.u32 [#allocation4], 4
          %s325 = int_to_ptr.vmem [resolvable:$true] %s324
          %327 = dma.hbm_to_vmem [thread:$0]  %s8, 16, %s325, [#allocation5]
        $region44: #{grid_deformation_decoder_forward.1} parent=11 // pred_fallthru
          _
        // Predicated region
        $region45: #{grid_deformation_decoder_forward.1} parent=11 // pred_check
          %p328 = pneg %p234
        $region46: #{grid_deformation_decoder_forward.1} parent=11 // pred_check_branch
          %330 = sbr.rel (%p328) target = $region48
        $region47: #{grid_deformation_decoder_forward.1} parent=11 // pred_region
          %s332 = ssub.s32 128, 128
          %333 = vsyncadd [#allocation7], %s332
          %s334 = sshll.u32 [#allocation6], 4
          %s335 = int_to_ptr.vmem [resolvable:$true] %s334
          %340 = dma.hbm_to_vmem [thread:$0]  %s9, 128, %s335, [#allocation7], 64, 64, 4
        $region48: #{grid_deformation_decoder_forward.1} parent=11 // pred_fallthru
          _
        // Predicated region
        $region49: #{grid_deformation_decoder_forward.1} parent=11 // pred_check
          %p341 = pneg %p255
        $region50: #{grid_deformation_decoder_forward.1} parent=11 // pred_check_branch
          %343 = sbr.rel (%p341) target = $region52
        $region51: #{grid_deformation_decoder_forward.1} parent=11 // pred_region
          %s345 = ssub.s32 16, 16
          %346 = vsyncadd [#allocation7], %s345
          %s348 = sshll.u32 [#allocation8], 4
          %s349 = int_to_ptr.vmem [resolvable:$true] %s348
          %351 = dma.hbm_to_vmem [thread:$0]  %s10, 16, %s349, [#allocation7]
        $region52: #{grid_deformation_decoder_forward.1} parent=11 // pred_fallthru
          _
      $region12: #{grid_deformation_decoder_forward.1} parent=5 // pred_fallthru
        _
      %p352 = scmp.lt.s32.totalorder %s19, 2
      // Predicated region
      $region53: #{grid_deformation_decoder_forward.1} parent=5 // pred_check
        %p353 = pneg %p352
      $region54: #{grid_deformation_decoder_forward.1} parent=5 // pred_check_branch
        %355 = sbr.rel (%p353) target = $region56
      $region55: #{grid_deformation_decoder_forward.1} parent=5 // pred_region
        // Predicated region
        $region57: #{grid_deformation_decoder_forward.1} parent=55 // pred_check
          %p356 = pneg %p39
        $region58: #{grid_deformation_decoder_forward.1} parent=55 // pred_check_branch
          %358 = sbr.rel (%p356) target = $region60
        $region59: #{grid_deformation_decoder_forward.1} parent=55 // pred_region
          %p359 = scmp.lt.s32.totalorder %s19, 1
          %s360 = scalar_select %p359, %s19, 1
          %s361 = smul.addr %s360, 8
          %s362 = scalar_lea.vmem %s0, %s361
        $region60: #{grid_deformation_decoder_forward.1} parent=55 // pred_fallthru
          _
      $region56: #{grid_deformation_decoder_forward.1} parent=5 // pred_fallthru
        _
      %p363 = scmp.le.s32.totalorder 1, %s19
      %p364 = scmp.lt.s32.totalorder %s19, 3
      %p365 = pnand %p363, %p364
      %p366 = pneg %p365
      // Predicated region
      $region61: #{grid_deformation_decoder_forward.1} parent=5 // pred_check
        _
      $region62: #{grid_deformation_decoder_forward.1} parent=5 // pred_check_branch
        %368 = sbr.rel (%p365) target = $region64
      $region63: #{grid_deformation_decoder_forward.1} parent=5 // pred_region
        %s369 = ssub.s32 %s19, 1
        // Predicated region
        $region65: #{grid_deformation_decoder_forward.1} parent=63 // pred_check
          %p370 = pneg %p213
        $region66: #{grid_deformation_decoder_forward.1} parent=63 // pred_check_branch
          %372 = sbr.rel (%p370) target = $region68
        $region67: #{grid_deformation_decoder_forward.1} parent=63 // pred_region
          %373 = dma.done [#allocation5], 16
        $region68: #{grid_deformation_decoder_forward.1} parent=63 // pred_fallthru
          _
        // Predicated region
        $region69: #{grid_deformation_decoder_forward.1} parent=63 // pred_check
          %p374 = pneg %p234
        $region70: #{grid_deformation_decoder_forward.1} parent=63 // pred_check_branch
          %376 = sbr.rel (%p374) target = $region72
        $region71: #{grid_deformation_decoder_forward.1} parent=63 // pred_region
          %377 = dma.done [#allocation7], 128
        $region72: #{grid_deformation_decoder_forward.1} parent=63 // pred_fallthru
          _
        // Predicated region
        $region73: #{grid_deformation_decoder_forward.1} parent=63 // pred_check
          %p378 = pneg %p255
        $region74: #{grid_deformation_decoder_forward.1} parent=63 // pred_check_branch
          %380 = sbr.rel (%p378) target = $region76
        $region75: #{grid_deformation_decoder_forward.1} parent=63 // pred_region
          %381 = dma.done [#allocation7], 16
        $region76: #{grid_deformation_decoder_forward.1} parent=63 // pred_fallthru
          _
        %p382 = scmp.lt.s32.totalorder %s24, 1
        %s383 = scalar_select %p382, %s24, 1
        %s384 = smul.addr %s383, 8
        %s385 = scalar_lea.vmem %s0, %s384
        %p386 = pneg %p45
        %p387 = pneg %p42
        %p388 = pneg %p66
        %p389 = pneg %p63
        %p390 = pneg %p87
        %p391 = pneg %p84
        %p392 = pneg %p108
        %p393 = pneg %p105
        %p394 = pneg %p129
        %p395 = pneg %p126
        %p396 = pneg %p150
        %p397 = pneg %p147
        %p398 = pneg %p171
        %p399 = pneg %p168
        %p400 = pneg %p192
        %p401 = pneg %p189
        %p402 = pneg %p213
        %p403 = pneg %p210
        %p404 = pneg %p234
        %p405 = pneg %p231
        %p406 = pneg %p255
        %p407 = pneg %p252
        %p408 = pneg %p281
        %p409 = pneg %p278
        %s410 = smul.u32 25, %s24
        %p411 = scmp.lt.s32.totalorder %s410, 49
        %s412 = scalar_select %p411, %s410, 49
        %s413 = smul.addr %s412, 8
        %s414 = scalar_lea.vmem %s11, %s413
        %p415 = scmp.lt.s32.totalorder %s24, 1
        %s416 = scalar_select %p415, %s24, 1
        %s417 = smul.addr %s416, 8
        %s418 = scalar_lea.vmem %s0, %s417
        %s419 = smul.u32 25, %s24
        %p420 = scmp.lt.s32.totalorder %s419, 49
        %s421 = scalar_select %p420, %s419, 49
        %s422 = smul.addr %s421, 8
        %s423 = scalar_lea.vmem %s11, %s422
        %s424 = smul.u32 25, %s24
        %v426 = vld [vmem:[%s418] sm:$0xff]
        %v427 = vld [vmem:[%s2] sm:$0xf]
        %v428 = vld [vmem:[%s2 + $0x4] sm:$0xf]
        %v429 = vld [vmem:[%s2 + $0x8] sm:$0xf]
        %v430 = vld [vmem:[%s2 + $0xc] sm:$0xf]
        %v431 = vld [vmem:[%s3] sm:$0x1]
        %v432 = vpack.c.bf16 %v426, %v426
        %v434 = vlaneseq
        %v435 = vshrl.u32 %v434, 7
        %v436 = vsub.s32 0, %v435
        %v437 = vrot.slane %v431, %v436
        %v443 = vunpack.c.l.b16 %v427
        %v444 = vunpack.c.l.b16 %v428
        %v445 = vunpack.c.l.b16 %v429
        %v446 = vunpack.c.l.b16 %v430
        %v447 = vpack.c.b16 %v444, %v443
        %v448 = vpack.c.b16 %v446, %v445
        %vm451 = vcmask 261120
        %v453 = vsel %vm451, %v432, 0
        %455 = vmatprep.subr.bf16.mxu0 0
        %456 = vmatpush1.bf16.msra.mxu0 %v447
        %457 = vmatprep.subr.bf16.mxu0 0
        %458 = vmatpush1.bf16.msra.mxu0 %v448
        %459 = vmatprep.subr.bf16.mxu0 0
        %460 = vmatpush1.bf16.msra.mxu0 0
        %461 = vmatprep.subr.bf16.mxu0 0
        %462 = vmatpush1.bf16.msra.mxu0 0
        %463 = vmatprep.subr.bf16.mxu0 0
        %464 = vmatpush1.bf16.msra.mxu0 0
        %465 = vmatprep.subr.bf16.mxu0 0
        %466 = vmatpush1.bf16.msra.mxu0 0
        %467 = vmatprep.subr.bf16.mxu0 0
        %468 = vmatpush1.bf16.msra.mxu0 0
        %469 = vmatprep.subr.bf16.mxu0 0
        %470 = vmatpush1.bf16.msra.mxu0 0
        %471 = vmatprep.subr.bf16.mxu0 0
        %472 = vmatpush1.bf16.msra.mxu0 0
        %473 = vmatprep.subr.bf16.mxu0 0
        %474 = vmatpush1.bf16.msra.mxu0 0
        %475 = vmatprep.subr.bf16.mxu0 0
        %476 = vmatpush1.bf16.msra.mxu0 0
        %477 = vmatprep.subr.bf16.mxu0 0
        %478 = vmatpush1.bf16.msra.mxu0 0
        %479 = vmatprep.subr.bf16.mxu0 0
        %480 = vmatpush1.bf16.msra.mxu0 0
        %481 = vmatprep.subr.bf16.mxu0 0
        %482 = vmatpush1.bf16.msra.mxu0 0
        %483 = vmatprep.subr.bf16.mxu0 0
        %484 = vmatpush1.bf16.msra.mxu0 0
        %485 = vmatprep.subr.bf16.mxu0 0
        %486 = vmatpush1.bf16.msra.mxu0 0
        %487 = vmatprep.mubr.bf16.mxu0 0
        %488 = vmatmul.mubr.bf16.gmra.mrb[0].mxu0 %v453
        %v489 = vpop.f32.mrb[0].mxu0
        %v490 = vadd.f32 %v437, %v489
        %v491 = vpop.f32.mrb[0].mxu0
        %v492 = vpop.f32.mrb[0].mxu0
        %v493 = vpop.f32.mrb[0].mxu0
        %494 = vdwg.mxu0
        %v495 = vmax.f32 %v490, 0.0
        %v496 = vld [vmem:[%s4] sm:$0xf]
        %v497 = vld [vmem:[%s4 + $0x4] sm:$0xf]
        %v498 = vld [vmem:[%s4 + $0x8] sm:$0xf]
        %v499 = vld [vmem:[%s4 + $0xc] sm:$0xf]
        %v500 = vld [vmem:[%s5] sm:$0x1]
        %v501 = vpack.c.bf16 %v495, %v495
        %v503 = vlaneseq
        %v504 = vshrl.u32 %v503, 7
        %v505 = vsub.s32 0, %v504
        %v506 = vrot.slane %v500, %v505
        %v512 = vunpack.c.l.b16 %v496
        %v513 = vunpack.c.l.b16 %v497
        %v514 = vunpack.c.l.b16 %v498
        %v515 = vunpack.c.l.b16 %v499
        %v516 = vpack.c.b16 %v513, %v512
        %v517 = vpack.c.b16 %v515, %v514
        %v521 = vsel %vm451, %v501, 0
        %523 = vmatprep.subr.bf16.mxu0 0
        %524 = vmatpush1.bf16.msra.mxu0 %v516
        %525 = vmatprep.subr.bf16.mxu0 0
        %526 = vmatpush1.bf16.msra.mxu0 %v517
        %527 = vmatprep.subr.bf16.mxu0 0
        %528 = vmatpush1.bf16.msra.mxu0 0
        %529 = vmatprep.subr.bf16.mxu0 0
        %530 = vmatpush1.bf16.msra.mxu0 0
        %531 = vmatprep.subr.bf16.mxu0 0
        %532 = vmatpush1.bf16.msra.mxu0 0
        %533 = vmatprep.subr.bf16.mxu0 0
        %534 = vmatpush1.bf16.msra.mxu0 0
        %535 = vmatprep.subr.bf16.mxu0 0
        %536 = vmatpush1.bf16.msra.mxu0 0
        %537 = vmatprep.subr.bf16.mxu0 0
        %538 = vmatpush1.bf16.msra.mxu0 0
        %539 = vmatprep.subr.bf16.mxu0 0
        %540 = vmatpush1.bf16.msra.mxu0 0
        %541 = vmatprep.subr.bf16.mxu0 0
        %542 = vmatpush1.bf16.msra.mxu0 0
        %543 = vmatprep.subr.bf16.mxu0 0
        %544 = vmatpush1.bf16.msra.mxu0 0
        %545 = vmatprep.subr.bf16.mxu0 0
        %546 = vmatpush1.bf16.msra.mxu0 0
        %547 = vmatprep.subr.bf16.mxu0 0
        %548 = vmatpush1.bf16.msra.mxu0 0
        %549 = vmatprep.subr.bf16.mxu0 0
        %550 = vmatpush1.bf16.msra.mxu0 0
        %551 = vmatprep.subr.bf16.mxu0 0
        %552 = vmatpush1.bf16.msra.mxu0 0
        %553 = vmatprep.subr.bf16.mxu0 0
        %554 = vmatpush1.bf16.msra.mxu0 0
        %555 = vmatprep.mubr.bf16.mxu0 0
        %556 = vmatmul.mubr.bf16.gmra.mrb[0].mxu0 %v521
        %v557 = vpop.f32.mrb[0].mxu0
        %v558 = vadd.f32 %v506, %v557
        %v559 = vpop.f32.mrb[0].mxu0
        %v560 = vpop.f32.mrb[0].mxu0
        %v561 = vpop.f32.mrb[0].mxu0
        %562 = vdwg.mxu0
        %v563 = vmax.f32 %v558, 0.0
        %v564 = vld [vmem:[%s6] sm:$0xf]
        %v565 = vld [vmem:[%s6 + $0x4] sm:$0xf]
        %v566 = vpack.c.bf16 %v563, %v563
        %v569 = vunpack.c.l.b16 %v564
        %v570 = vunpack.c.l.b16 %v565
        %v571 = vpack.c.b16 %v570, %v569
        %vm573 = vcmask 130048
        %v575 = vsel %vm573, %v566, 0
        %577 = vmatprep.subr.bf16.mxu0 0
        %578 = vmatpush1.bf16.msra.mxu0 %v571
        %579 = vmatprep.subr.bf16.mxu0 0
        %580 = vmatpush1.bf16.msra.mxu0 0
        %581 = vmatprep.subr.bf16.mxu0 0
        %582 = vmatpush1.bf16.msra.mxu0 0
        %583 = vmatprep.subr.bf16.mxu0 0
        %584 = vmatpush1.bf16.msra.mxu0 0
        %585 = vmatprep.subr.bf16.mxu0 0
        %586 = vmatpush1.bf16.msra.mxu0 0
        %587 = vmatprep.subr.bf16.mxu0 0
        %588 = vmatpush1.bf16.msra.mxu0 0
        %589 = vmatprep.subr.bf16.mxu0 0
        %590 = vmatpush1.bf16.msra.mxu0 0
        %591 = vmatprep.subr.bf16.mxu0 0
        %592 = vmatpush1.bf16.msra.mxu0 0
        %593 = vmatprep.subr.bf16.mxu0 0
        %594 = vmatpush1.bf16.msra.mxu0 0
        %595 = vmatprep.subr.bf16.mxu0 0
        %596 = vmatpush1.bf16.msra.mxu0 0
        %597 = vmatprep.subr.bf16.mxu0 0
        %598 = vmatpush1.bf16.msra.mxu0 0
        %599 = vmatprep.subr.bf16.mxu0 0
        %600 = vmatpush1.bf16.msra.mxu0 0
        %601 = vmatprep.subr.bf16.mxu0 0
        %602 = vmatpush1.bf16.msra.mxu0 0
        %603 = vmatprep.subr.bf16.mxu0 0
        %604 = vmatpush1.bf16.msra.mxu0 0
        %605 = vmatprep.subr.bf16.mxu0 0
        %606 = vmatpush1.bf16.msra.mxu0 0
        %607 = vmatprep.subr.bf16.mxu0 0
        %608 = vmatpush1.bf16.msra.mxu0 0
        %609 = vmatprep.mubr.bf16.mxu0 0
        %610 = vmatmul.mubr.bf16.gmra.mrb[0].mxu0 %v575
        %v611 = vpop.f32.mrb[0].mxu0
        %v612 = vadd.f32 0.0, %v611
        %v613 = vpop.f32.mrb[0].mxu0
        %v614 = vpop.f32.mrb[0].mxu0
        %v615 = vpop.f32.mrb[0].mxu0
        %616 = vdwg.mxu0
        %vm617 = vcmask 523264
        %618 = vst.msk [vmem:[#allocation2] sm:$0xff] %vm617, %v612
        %v619 = vld [vmem:[%s1] sm:$0xff]
        %v620 = vld [vmem:[%s1 + $0x8] sm:$0xff]
        %v621 = vld [vmem:[%s1 + $0x10] sm:$0xff]
        %v622 = vld [vmem:[%s1 + $0x18] sm:$0x1]
        %v623 = vld [vmem:[#allocation2] sm:$0x1]
        %v624 = vlaneseq
        %v625 = vshrl.u32 %v624, 7
        %v626 = vsub.s32 0, %v625
        %v627 = vrot.slane %v623, %v626
        %v628 = vadd.f32 %v627, %v619
        %v629 = vadd.f32 %v627, %v620
        %v630 = vadd.f32 %v627, %v621
        %v631 = vadd.f32 %v627, %v622
        %v632 = vmax.f32 %v628, 0.0
        %v633 = vmax.f32 %v629, 0.0
        %v634 = vmax.f32 %v630, 0.0
        %v635 = vmax.f32 %v631, 0.0
        %636 = vst.msk [vmem:[#allocation3] sm:$0xff] %vm617, %v632
        %637 = vst.msk [vmem:[#allocation3 + $0x8] sm:$0xff] %vm617, %v633
        %638 = vst.msk [vmem:[#allocation3 + $0x10] sm:$0xff] %vm617, %v634
        %vm639 = vcmask 516096
        %640 = vst.msk [vmem:[#allocation3 + $0x18] sm:$0x1] %vm639, %v635
        %v641 = vld [vmem:[#allocation2 + $0x1] sm:$0x1]
        %v642 = vlaneseq
        %v643 = vshrl.u32 %v642, 7
        %v644 = vsub.s32 0, %v643
        %v645 = vrot.slane %v641, %v644
        %v646 = vadd.f32 %v645, %v619
        %v647 = vadd.f32 %v645, %v620
        %v648 = vadd.f32 %v645, %v621
        %v649 = vadd.f32 %v645, %v622
        %v650 = vmax.f32 %v646, 0.0
        %v651 = vmax.f32 %v647, 0.0
        %v652 = vmax.f32 %v648, 0.0
        %v653 = vmax.f32 %v649, 0.0
        %654 = vst.msk [vmem:[#allocation3 + $0x19] sm:$0xff] %vm617, %v650
        %655 = vst.msk [vmem:[#allocation3 + $0x21] sm:$0xff] %vm617, %v651
        %656 = vst.msk [vmem:[#allocation3 + $0x29] sm:$0xff] %vm617, %v652
        %657 = vst.msk [vmem:[#allocation3 + $0x31] sm:$0x1] %vm639, %v653
        %v658 = vld [vmem:[#allocation2 + $0x2] sm:$0x1]
        %v659 = vlaneseq
        %v660 = vshrl.u32 %v659, 7
        %v661 = vsub.s32 0, %v660
        %v662 = vrot.slane %v658, %v661
        %v663 = vadd.f32 %v662, %v619
        %v664 = vadd.f32 %v662, %v620
        %v665 = vadd.f32 %v662, %v621
        %v666 = vadd.f32 %v662, %v622
        %v667 = vmax.f32 %v663, 0.0
        %v668 = vmax.f32 %v664, 0.0
        %v669 = vmax.f32 %v665, 0.0
        %v670 = vmax.f32 %v666, 0.0
        %671 = vst.msk [vmem:[#allocation3 + $0x32] sm:$0xff] %vm617, %v667
        %672 = vst.msk [vmem:[#allocation3 + $0x3a] sm:$0xff] %vm617, %v668
        %673 = vst.msk [vmem:[#allocation3 + $0x42] sm:$0xff] %vm617, %v669
        %674 = vst.msk [vmem:[#allocation3 + $0x4a] sm:$0x1] %vm639, %v670
        %v675 = vld [vmem:[#allocation2 + $0x3] sm:$0x1]
        %v676 = vlaneseq
        %v677 = vshrl.u32 %v676, 7
        %v678 = vsub.s32 0, %v677
        %v679 = vrot.slane %v675, %v678
        %v680 = vadd.f32 %v679, %v619
        %v681 = vadd.f32 %v679, %v620
        %v682 = vadd.f32 %v679, %v621
        %v683 = vadd.f32 %v679, %v622
        %v684 = vmax.f32 %v680, 0.0
        %v685 = vmax.f32 %v681, 0.0
        %v686 = vmax.f32 %v682, 0.0
        %v687 = vmax.f32 %v683, 0.0
        %688 = vst.msk [vmem:[#allocation3 + $0x4b] sm:$0xff] %vm617, %v684
        %689 = vst.msk [vmem:[#allocation3 + $0x53] sm:$0xff] %vm617, %v685
        %690 = vst.msk [vmem:[#allocation3 + $0x5b] sm:$0xff] %vm617, %v686
        %691 = vst.msk [vmem:[#allocation3 + $0x63] sm:$0x1] %vm639, %v687
        %v692 = vld [vmem:[#allocation2 + $0x4] sm:$0x1]
        %v693 = vlaneseq
        %v694 = vshrl.u32 %v693, 7
        %v695 = vsub.s32 0, %v694
        %v696 = vrot.slane %v692, %v695
        %v697 = vadd.f32 %v696, %v619
        %v698 = vadd.f32 %v696, %v620
        %v699 = vadd.f32 %v696, %v621
        %v700 = vadd.f32 %v696, %v622
        %v701 = vmax.f32 %v697, 0.0
        %v702 = vmax.f32 %v698, 0.0
        %v703 = vmax.f32 %v699, 0.0
        %v704 = vmax.f32 %v700, 0.0
        %705 = vst.msk [vmem:[#allocation3 + $0x64] sm:$0xff] %vm617, %v701
        %706 = vst.msk [vmem:[#allocation3 + $0x6c] sm:$0xff] %vm617, %v702
        %707 = vst.msk [vmem:[#allocation3 + $0x74] sm:$0xff] %vm617, %v703
        %708 = vst.msk [vmem:[#allocation3 + $0x7c] sm:$0x1] %vm639, %v704
        %v709 = vld [vmem:[#allocation2 + $0x5] sm:$0x1]
        %v710 = vlaneseq
        %v711 = vshrl.u32 %v710, 7
        %v712 = vsub.s32 0, %v711
        %v713 = vrot.slane %v709, %v712
        %v714 = vadd.f32 %v713, %v619
        %v715 = vadd.f32 %v713, %v620
        %v716 = vadd.f32 %v713, %v621
        %v717 = vadd.f32 %v713, %v622
        %v718 = vmax.f32 %v714, 0.0
        %v719 = vmax.f32 %v715, 0.0
        %v720 = vmax.f32 %v716, 0.0
        %v721 = vmax.f32 %v717, 0.0
        %722 = vst.msk [vmem:[#allocation3 + $0x7d] sm:$0xff] %vm617, %v718
        %723 = vst.msk [vmem:[#allocation3 + $0x85] sm:$0xff] %vm617, %v719
        %724 = vst.msk [vmem:[#allocation3 + $0x8d] sm:$0xff] %vm617, %v720
        %725 = vst.msk [vmem:[#allocation3 + $0x95] sm:$0x1] %vm639, %v721
        %v726 = vld [vmem:[#allocation2 + $0x6] sm:$0x1]
        %v727 = vlaneseq
        %v728 = vshrl.u32 %v727, 7
        %v729 = vsub.s32 0, %v728
        %v730 = vrot.slane %v726, %v729
        %v731 = vadd.f32 %v730, %v619
        %v732 = vadd.f32 %v730, %v620
        %v733 = vadd.f32 %v730, %v621
        %v734 = vadd.f32 %v730, %v622
        %v735 = vmax.f32 %v731, 0.0
        %v736 = vmax.f32 %v732, 0.0
        %v737 = vmax.f32 %v733, 0.0
        %v738 = vmax.f32 %v734, 0.0
        %739 = vst.msk [vmem:[#allocation3 + $0x96] sm:$0xff] %vm617, %v735
        %740 = vst.msk [vmem:[#allocation3 + $0x9e] sm:$0xff] %vm617, %v736
        %741 = vst.msk [vmem:[#allocation3 + $0xa6] sm:$0xff] %vm617, %v737
        %742 = vst.msk [vmem:[#allocation3 + $0xae] sm:$0x1] %vm639, %v738
        %v743 = vld [vmem:[#allocation2 + $0x7] sm:$0x1]
        %v744 = vlaneseq
        %v745 = vshrl.u32 %v744, 7
        %v746 = vsub.s32 0, %v745
        %v747 = vrot.slane %v743, %v746
        %v748 = vadd.f32 %v747, %v619
        %v749 = vadd.f32 %v747, %v620
        %v750 = vadd.f32 %v747, %v621
        %v751 = vadd.f32 %v747, %v622
        %v752 = vmax.f32 %v748, 0.0
        %v753 = vmax.f32 %v749, 0.0
        %v754 = vmax.f32 %v750, 0.0
        %v755 = vmax.f32 %v751, 0.0
        %756 = vst.msk [vmem:[#allocation3 + $0xaf] sm:$0xff] %vm617, %v752
        %757 = vst.msk [vmem:[#allocation3 + $0xb7] sm:$0xff] %vm617, %v753
        %758 = vst.msk [vmem:[#allocation3 + $0xbf] sm:$0xff] %vm617, %v754
        %759 = vst.msk [vmem:[#allocation3 + $0xc7] sm:$0x1] %vm639, %v755
        %v760 = vld [vmem:[#allocation3] sm:$0xff]
        %v761 = vld [vmem:[#allocation3 + $0x8] sm:$0xff]
        %v762 = vld [vmem:[#allocation3 + $0x10] sm:$0xff]
        %v763 = vld [vmem:[#allocation3 + $0x18] sm:$0xff]
        %v764 = vld [vmem:[#allocation3 + $0x20] sm:$0xff]
        %v765 = vld [vmem:[#allocation3 + $0x28] sm:$0xff]
        %v766 = vld [vmem:[#allocation3 + $0x30] sm:$0xff]
        %v767 = vld [vmem:[#allocation3 + $0x38] sm:$0xff]
        %v768 = vld [vmem:[#allocation3 + $0x40] sm:$0xff]
        %v769 = vld [vmem:[#allocation3 + $0x48] sm:$0xff]
        %v770 = vld [vmem:[#allocation3 + $0x50] sm:$0xff]
        %v771 = vld [vmem:[#allocation3 + $0x58] sm:$0xff]
        %v772 = vld [vmem:[#allocation3 + $0x60] sm:$0xff]
        %v773 = vld [vmem:[#allocation3 + $0x68] sm:$0xff]
        %v774 = vld [vmem:[#allocation3 + $0x70] sm:$0xff]
        %v775 = vld [vmem:[#allocation3 + $0x78] sm:$0xff]
        %v776 = vld [vmem:[#allocation3 + $0x80] sm:$0xff]
        %v777 = vld [vmem:[#allocation3 + $0x88] sm:$0xff]
        %v778 = vld [vmem:[#allocation3 + $0x90] sm:$0xff]
        %v779 = vld [vmem:[#allocation3 + $0x98] sm:$0xff]
        %v780 = vld [vmem:[#allocation3 + $0xa0] sm:$0xff]
        %v781 = vld [vmem:[#allocation3 + $0xa8] sm:$0xff]
        %v782 = vld [vmem:[#allocation3 + $0xb0] sm:$0xff]
        %v783 = vld [vmem:[#allocation3 + $0xb8] sm:$0xff]
        %v784 = vld [vmem:[#allocation3 + $0xc0] sm:$0xff]
        %v785 = vld [vmem:[%s7] sm:$0xf]
        %v786 = vld [vmem:[%s7 + $0x4] sm:$0xf]
        %v787 = vld [vmem:[%s7 + $0x8] sm:$0xf]
        %v788 = vld [vmem:[%s7 + $0xc] sm:$0xf]
        %v789 = vld [vmem:[%s7 + $0x10] sm:$0xf]
        %v790 = vld [vmem:[%s7 + $0x14] sm:$0xf]
        %v791 = vld [vmem:[%s7 + $0x18] sm:$0xf]
        %v792 = vld [vmem:[%s7 + $0x1c] sm:$0xf]
        %v793 = vld [vmem:[#allocation4] sm:$0x1]
        %v794 = vpack.c.bf16 %v761, %v760
        %v795 = vpack.c.bf16 %v763, %v762
        %v796 = vpack.c.bf16 %v765, %v764
        %v797 = vpack.c.bf16 %v767, %v766
        %v798 = vpack.c.bf16 %v769, %v768
        %v799 = vpack.c.bf16 %v771, %v770
        %v800 = vpack.c.bf16 %v773, %v772
        %v801 = vpack.c.bf16 %v775, %v774
        %v802 = vpack.c.bf16 %v777, %v776
        %v803 = vpack.c.bf16 %v779, %v778
        %v804 = vpack.c.bf16 %v781, %v780
        %v805 = vpack.c.bf16 %v783, %v782
        %v806 = vpack.c.bf16 %v784, %v784
        %v808 = vlaneseq
        %v809 = vshrl.u32 %v808, 7
        %v810 = vsub.s32 0, %v809
        %v811 = vrot.slane %v793, %v810
        %v821 = vunpack.c.l.b16 %v785
        %v822 = vunpack.c.l.b16 %v786
        %v823 = vunpack.c.l.b16 %v787
        %v824 = vunpack.c.l.b16 %v788
        %v825 = vunpack.c.l.b16 %v789
        %v826 = vunpack.c.l.b16 %v790
        %v827 = vunpack.c.l.b16 %v791
        %v828 = vunpack.c.l.b16 %v792
        %v829 = vpack.c.b16 %v822, %v821
        %v830 = vpack.c.b16 %v824, %v823
        %v831 = vpack.c.b16 %v826, %v825
        %v832 = vpack.c.b16 %v828, %v827
        %v838 = vsel %vm617, %v794, 0
        %v841 = vsel %vm617, %v795, 0
        %v844 = vsel %vm617, %v796, 0
        %v847 = vsel %vm617, %v797, 0
        %v850 = vsel %vm617, %v798, 0
        %v853 = vsel %vm617, %v799, 0
        %v856 = vsel %vm617, %v800, 0
        %v859 = vsel %vm617, %v801, 0
        %v862 = vsel %vm617, %v802, 0
        %v865 = vsel %vm617, %v803, 0
        %v868 = vsel %vm617, %v804, 0
        %v871 = vsel %vm617, %v805, 0
        %v874 = vsel %vm617, %v806, 0
        %876 = vmatprep.subr.bf16.mxu0 0
        %877 = vmatpush1.bf16.msra.mxu0 %v829
        %878 = vmatprep.subr.bf16.mxu0 0
        %879 = vmatpush1.bf16.msra.mxu0 %v830
        %880 = vmatprep.subr.bf16.mxu0 0
        %881 = vmatpush1.bf16.msra.mxu0 %v831
        %882 = vmatprep.subr.bf16.mxu0 0
        %883 = vmatpush1.bf16.msra.mxu0 %v832
        %884 = vmatprep.subr.bf16.mxu0 0
        %885 = vmatpush1.bf16.msra.mxu0 0
        %886 = vmatprep.subr.bf16.mxu0 0
        %887 = vmatpush1.bf16.msra.mxu0 0
        %888 = vmatprep.subr.bf16.mxu0 0
        %889 = vmatpush1.bf16.msra.mxu0 0
        %890 = vmatprep.subr.bf16.mxu0 0
        %891 = vmatpush1.bf16.msra.mxu0 0
        %892 = vmatprep.subr.bf16.mxu0 0
        %893 = vmatpush1.bf16.msra.mxu0 0
        %894 = vmatprep.subr.bf16.mxu0 0
        %895 = vmatpush1.bf16.msra.mxu0 0
        %896 = vmatprep.subr.bf16.mxu0 0
        %897 = vmatpush1.bf16.msra.mxu0 0
        %898 = vmatprep.subr.bf16.mxu0 0
        %899 = vmatpush1.bf16.msra.mxu0 0
        %900 = vmatprep.subr.bf16.mxu0 0
        %901 = vmatpush1.bf16.msra.mxu0 0
        %902 = vmatprep.subr.bf16.mxu0 0
        %903 = vmatpush1.bf16.msra.mxu0 0
        %904 = vmatprep.subr.bf16.mxu0 0
        %905 = vmatpush1.bf16.msra.mxu0 0
        %906 = vmatprep.subr.bf16.mxu0 0
        %907 = vmatpush1.bf16.msra.mxu0 0
        %908 = vmatprep.mubr.bf16.mxu0 0
        %909 = vmatmul.mubr.bf16.gmra.mrb[0].mxu0 %v838
        %v910 = vpop.f32.mrb[0].mxu0
        %v911 = vadd.f32 %v811, %v910
        %v912 = vpop.f32.mrb[0].mxu0
        %v913 = vpop.f32.mrb[0].mxu0
        %v914 = vadd.f32 %v811, %v913
        %v915 = vpop.f32.mrb[0].mxu0
        %916 = vmatprep.mubr.bf16.mxu0 0
        %917 = vmatmul.mubr.bf16.gmra.mrb[0].mxu0 %v841
        %v918 = vpop.f32.mrb[0].mxu0
        %v919 = vadd.f32 %v811, %v918
        %v920 = vpop.f32.mrb[0].mxu0
        %v921 = vpop.f32.mrb[0].mxu0
        %v922 = vadd.f32 %v811, %v921
        %v923 = vpop.f32.mrb[0].mxu0
        %924 = vmatprep.mubr.bf16.mxu0 0
        %925 = vmatmul.mubr.bf16.gmra.mrb[0].mxu0 %v844
        %v926 = vpop.f32.mrb[0].mxu0
        %v927 = vadd.f32 %v811, %v926
        %v928 = vpop.f32.mrb[0].mxu0
        %v929 = vpop.f32.mrb[0].mxu0
        %v930 = vadd.f32 %v811, %v929
        %v931 = vpop.f32.mrb[0].mxu0
        %932 = vmatprep.mubr.bf16.mxu0 0
        %933 = vmatmul.mubr.bf16.gmra.mrb[0].mxu0 %v847
        %v934 = vpop.f32.mrb[0].mxu0
        %v935 = vadd.f32 %v811, %v934
        %v936 = vpop.f32.mrb[0].mxu0
        %v937 = vpop.f32.mrb[0].mxu0
        %v938 = vadd.f32 %v811, %v937
        %v939 = vpop.f32.mrb[0].mxu0
        %940 = vmatprep.mubr.bf16.mxu0 0
        %941 = vmatmul.mubr.bf16.gmra.mrb[0].mxu0 %v850
        %v942 = vpop.f32.mrb[0].mxu0
        %v943 = vadd.f32 %v811, %v942
        %v944 = vpop.f32.mrb[0].mxu0
        %v945 = vpop.f32.mrb[0].mxu0
        %v946 = vadd.f32 %v811, %v945
        %v947 = vpop.f32.mrb[0].mxu0
        %948 = vmatprep.mubr.bf16.mxu0 0
        %949 = vmatmul.mubr.bf16.gmra.mrb[0].mxu0 %v853
        %v950 = vpop.f32.mrb[0].mxu0
        %v951 = vadd.f32 %v811, %v950
        %v952 = vpop.f32.mrb[0].mxu0
        %v953 = vpop.f32.mrb[0].mxu0
        %v954 = vadd.f32 %v811, %v953
        %v955 = vpop.f32.mrb[0].mxu0
        %956 = vmatprep.mubr.bf16.mxu0 0
        %957 = vmatmul.mubr.bf16.gmra.mrb[0].mxu0 %v856
        %v958 = vpop.f32.mrb[0].mxu0
        %v959 = vadd.f32 %v811, %v958
        %v960 = vpop.f32.mrb[0].mxu0
        %v961 = vpop.f32.mrb[0].mxu0
        %v962 = vadd.f32 %v811, %v961
        %v963 = vpop.f32.mrb[0].mxu0
        %964 = vmatprep.mubr.bf16.mxu0 0
        %965 = vmatmul.mubr.bf16.gmra.mrb[0].mxu0 %v859
        %v966 = vpop.f32.mrb[0].mxu0
        %v967 = vadd.f32 %v811, %v966
        %v968 = vpop.f32.mrb[0].mxu0
        %v969 = vpop.f32.mrb[0].mxu0
        %v970 = vadd.f32 %v811, %v969
        %v971 = vpop.f32.mrb[0].mxu0
        %972 = vmatprep.mubr.bf16.mxu0 0
        %973 = vmatmul.mubr.bf16.gmra.mrb[0].mxu0 %v862
        %v974 = vpop.f32.mrb[0].mxu0
        %v975 = vadd.f32 %v811, %v974
        %v976 = vpop.f32.mrb[0].mxu0
        %v977 = vpop.f32.mrb[0].mxu0
        %v978 = vadd.f32 %v811, %v977
        %v979 = vpop.f32.mrb[0].mxu0
        %980 = vmatprep.mubr.bf16.mxu0 0
        %981 = vmatmul.mubr.bf16.gmra.mrb[0].mxu0 %v865
        %v982 = vpop.f32.mrb[0].mxu0
        %v983 = vadd.f32 %v811, %v982
        %v984 = vpop.f32.mrb[0].mxu0
        %v985 = vpop.f32.mrb[0].mxu0
        %v986 = vadd.f32 %v811, %v985
        %v987 = vpop.f32.mrb[0].mxu0
        %988 = vmatprep.mubr.bf16.mxu0 0
        %989 = vmatmul.mubr.bf16.gmra.mrb[0].mxu0 %v868
        %v990 = vpop.f32.mrb[0].mxu0
        %v991 = vadd.f32 %v811, %v990
        %v992 = vpop.f32.mrb[0].mxu0
        %v993 = vpop.f32.mrb[0].mxu0
        %v994 = vadd.f32 %v811, %v993
        %v995 = vpop.f32.mrb[0].mxu0
        %996 = vmatprep.mubr.bf16.mxu0 0
        %997 = vmatmul.mubr.bf16.gmra.mrb[0].mxu0 %v871
        %v998 = vpop.f32.mrb[0].mxu0
        %v999 = vadd.f32 %v811, %v998
        %v1000 = vpop.f32.mrb[0].mxu0
        %v1001 = vpop.f32.mrb[0].mxu0
        %v1002 = vadd.f32 %v811, %v1001
        %v1003 = vpop.f32.mrb[0].mxu0
        %1004 = vmatprep.mubr.bf16.mxu0 0
        %1005 = vmatmul.mubr.bf16.gmra.mrb[0].mxu0 %v874
        %v1006 = vpop.f32.mrb[0].mxu0
        %v1007 = vadd.f32 %v811, %v1006
        %v1008 = vpop.f32.mrb[0].mxu0
        %v1009 = vpop.f32.mrb[0].mxu0
        %v1010 = vpop.f32.mrb[0].mxu0
        %1011 = vdwg.mxu0
        %v1012 = vmax.f32 %v911, 0.0
        %v1013 = vmax.f32 %v914, 0.0
        %v1014 = vmax.f32 %v919, 0.0
        %v1015 = vmax.f32 %v922, 0.0
        %v1016 = vmax.f32 %v927, 0.0
        %v1017 = vmax.f32 %v930, 0.0
        %v1018 = vmax.f32 %v935, 0.0
        %v1019 = vmax.f32 %v938, 0.0
        %v1020 = vmax.f32 %v943, 0.0
        %v1021 = vmax.f32 %v946, 0.0
        %v1022 = vmax.f32 %v951, 0.0
        %v1023 = vmax.f32 %v954, 0.0
        %v1024 = vmax.f32 %v959, 0.0
        %v1025 = vmax.f32 %v962, 0.0
        %v1026 = vmax.f32 %v967, 0.0
        %v1027 = vmax.f32 %v970, 0.0
        %v1028 = vmax.f32 %v975, 0.0
        %v1029 = vmax.f32 %v978, 0.0
        %v1030 = vmax.f32 %v983, 0.0
        %v1031 = vmax.f32 %v986, 0.0
        %v1032 = vmax.f32 %v991, 0.0
        %v1033 = vmax.f32 %v994, 0.0
        %v1034 = vmax.f32 %v999, 0.0
        %v1035 = vmax.f32 %v1002, 0.0
        %v1036 = vmax.f32 %v1007, 0.0
        %v1037 = vld [vmem:[#allocation6] sm:$0xf]
        %v1038 = vld [vmem:[#allocation6 + $0x4] sm:$0xf]
        %v1039 = vld [vmem:[#allocation8] sm:$0x1]
        %v1040 = vpack.c.bf16 %v1013, %v1012
        %v1041 = vpack.c.bf16 %v1015, %v1014
        %v1042 = vpack.c.bf16 %v1017, %v1016
        %v1043 = vpack.c.bf16 %v1019, %v1018
        %v1044 = vpack.c.bf16 %v1021, %v1020
        %v1045 = vpack.c.bf16 %v1023, %v1022
        %v1046 = vpack.c.bf16 %v1025, %v1024
        %v1047 = vpack.c.bf16 %v1027, %v1026
        %v1048 = vpack.c.bf16 %v1029, %v1028
        %v1049 = vpack.c.bf16 %v1031, %v1030
        %v1050 = vpack.c.bf16 %v1033, %v1032
        %v1051 = vpack.c.bf16 %v1035, %v1034
        %v1052 = vpack.c.bf16 %v1036, %v1036
        %v1054 = vlaneseq
        %v1055 = vshrl.u32 %v1054, 7
        %v1056 = vsub.s32 0, %v1055
        %v1057 = vrot.slane %v1039, %v1056
        %v1061 = vunpack.c.l.b16 %v1037
        %v1062 = vunpack.c.l.b16 %v1038
        %v1063 = vpack.c.b16 %v1062, %v1061
        %v1066 = vsel %vm573, %v1040, 0
        %v1069 = vsel %vm573, %v1041, 0
        %v1072 = vsel %vm573, %v1042, 0
        %v1075 = vsel %vm573, %v1043, 0
        %v1078 = vsel %vm573, %v1044, 0
        %v1081 = vsel %vm573, %v1045, 0
        %v1084 = vsel %vm573, %v1046, 0
        %v1087 = vsel %vm573, %v1047, 0
        %v1090 = vsel %vm573, %v1048, 0
        %v1093 = vsel %vm573, %v1049, 0
        %v1096 = vsel %vm573, %v1050, 0
        %v1099 = vsel %vm573, %v1051, 0
        %v1102 = vsel %vm573, %v1052, 0
        %1104 = vmatprep.subr.bf16.mxu0 0
        %1105 = vmatpush1.bf16.msra.mxu0 %v1063
        %1106 = vmatprep.subr.bf16.mxu0 0
        %1107 = vmatpush1.bf16.msra.mxu0 0
        %1108 = vmatprep.subr.bf16.mxu0 0
        %1109 = vmatpush1.bf16.msra.mxu0 0
        %1110 = vmatprep.subr.bf16.mxu0 0
        %1111 = vmatpush1.bf16.msra.mxu0 0
        %1112 = vmatprep.subr.bf16.mxu0 0
        %1113 = vmatpush1.bf16.msra.mxu0 0
        %1114 = vmatprep.subr.bf16.mxu0 0
        %1115 = vmatpush1.bf16.msra.mxu0 0
        %1116 = vmatprep.subr.bf16.mxu0 0
        %1117 = vmatpush1.bf16.msra.mxu0 0
        %1118 = vmatprep.subr.bf16.mxu0 0
        %1119 = vmatpush1.bf16.msra.mxu0 0
        %1120 = vmatprep.subr.bf16.mxu0 0
        %1121 = vmatpush1.bf16.msra.mxu0 0
        %1122 = vmatprep.subr.bf16.mxu0 0
        %1123 = vmatpush1.bf16.msra.mxu0 0
        %1124 = vmatprep.subr.bf16.mxu0 0
        %1125 = vmatpush1.bf16.msra.mxu0 0
        %1126 = vmatprep.subr.bf16.mxu0 0
        %1127 = vmatpush1.bf16.msra.mxu0 0
        %1128 = vmatprep.subr.bf16.mxu0 0
        %1129 = vmatpush1.bf16.msra.mxu0 0
        %1130 = vmatprep.subr.bf16.mxu0 0
        %1131 = vmatpush1.bf16.msra.mxu0 0
        %1132 = vmatprep.subr.bf16.mxu0 0
        %1133 = vmatpush1.bf16.msra.mxu0 0
        %1134 = vmatprep.subr.bf16.mxu0 0
        %1135 = vmatpush1.bf16.msra.mxu0 0
        %1136 = vmatprep.mubr.bf16.mxu0 0
        %1137 = vmatmul.mubr.bf16.gmra.mrb[0].mxu0 %v1066
        %v1138 = vpop.f32.mrb[0].mxu0
        %v1139 = vadd.f32 %v1057, %v1138
        %v1140 = vpop.f32.mrb[0].mxu0
        %v1141 = vpop.f32.mrb[0].mxu0
        %v1142 = vadd.f32 %v1057, %v1141
        %v1143 = vpop.f32.mrb[0].mxu0
        %1144 = vmatprep.mubr.bf16.mxu0 0
        %1145 = vmatmul.mubr.bf16.gmra.mrb[0].mxu0 %v1069
        %v1146 = vpop.f32.mrb[0].mxu0
        %v1147 = vadd.f32 %v1057, %v1146
        %v1148 = vpop.f32.mrb[0].mxu0
        %v1149 = vpop.f32.mrb[0].mxu0
        %v1150 = vadd.f32 %v1057, %v1149
        %v1151 = vpop.f32.mrb[0].mxu0
        %1152 = vmatprep.mubr.bf16.mxu0 0
        %1153 = vmatmul.mubr.bf16.gmra.mrb[0].mxu0 %v1072
        %v1154 = vpop.f32.mrb[0].mxu0
        %v1155 = vadd.f32 %v1057, %v1154
        %v1156 = vpop.f32.mrb[0].mxu0
        %v1157 = vpop.f32.mrb[0].mxu0
        %v1158 = vadd.f32 %v1057, %v1157
        %v1159 = vpop.f32.mrb[0].mxu0
        %1160 = vmatprep.mubr.bf16.mxu0 0
        %1161 = vmatmul.mubr.bf16.gmra.mrb[0].mxu0 %v1075
        %v1162 = vpop.f32.mrb[0].mxu0
        %v1163 = vadd.f32 %v1057, %v1162
        %v1164 = vpop.f32.mrb[0].mxu0
        %v1165 = vpop.f32.mrb[0].mxu0
        %v1166 = vadd.f32 %v1057, %v1165
        %v1167 = vpop.f32.mrb[0].mxu0
        %1168 = vmatprep.mubr.bf16.mxu0 0
        %1169 = vmatmul.mubr.bf16.gmra.mrb[0].mxu0 %v1078
        %v1170 = vpop.f32.mrb[0].mxu0
        %v1171 = vadd.f32 %v1057, %v1170
        %v1172 = vpop.f32.mrb[0].mxu0
        %v1173 = vpop.f32.mrb[0].mxu0
        %v1174 = vadd.f32 %v1057, %v1173
        %v1175 = vpop.f32.mrb[0].mxu0
        %1176 = vmatprep.mubr.bf16.mxu0 0
        %1177 = vmatmul.mubr.bf16.gmra.mrb[0].mxu0 %v1081
        %v1178 = vpop.f32.mrb[0].mxu0
        %v1179 = vadd.f32 %v1057, %v1178
        %v1180 = vpop.f32.mrb[0].mxu0
        %v1181 = vpop.f32.mrb[0].mxu0
        %v1182 = vadd.f32 %v1057, %v1181
        %v1183 = vpop.f32.mrb[0].mxu0
        %1184 = vmatprep.mubr.bf16.mxu0 0
        %1185 = vmatmul.mubr.bf16.gmra.mrb[0].mxu0 %v1084
        %v1186 = vpop.f32.mrb[0].mxu0
        %v1187 = vadd.f32 %v1057, %v1186
        %v1188 = vpop.f32.mrb[0].mxu0
        %v1189 = vpop.f32.mrb[0].mxu0
        %v1190 = vadd.f32 %v1057, %v1189
        %v1191 = vpop.f32.mrb[0].mxu0
        %1192 = vmatprep.mubr.bf16.mxu0 0
        %1193 = vmatmul.mubr.bf16.gmra.mrb[0].mxu0 %v1087
        %v1194 = vpop.f32.mrb[0].mxu0
        %v1195 = vadd.f32 %v1057, %v1194
        %v1196 = vpop.f32.mrb[0].mxu0
        %v1197 = vpop.f32.mrb[0].mxu0
        %v1198 = vadd.f32 %v1057, %v1197
        %v1199 = vpop.f32.mrb[0].mxu0
        %1200 = vmatprep.mubr.bf16.mxu0 0
        %1201 = vmatmul.mubr.bf16.gmra.mrb[0].mxu0 %v1090
        %v1202 = vpop.f32.mrb[0].mxu0
        %v1203 = vadd.f32 %v1057, %v1202
        %v1204 = vpop.f32.mrb[0].mxu0
        %v1205 = vpop.f32.mrb[0].mxu0
        %v1206 = vadd.f32 %v1057, %v1205
        %v1207 = vpop.f32.mrb[0].mxu0
        %1208 = vmatprep.mubr.bf16.mxu0 0
        %1209 = vmatmul.mubr.bf16.gmra.mrb[0].mxu0 %v1093
        %v1210 = vpop.f32.mrb[0].mxu0
        %v1211 = vadd.f32 %v1057, %v1210
        %v1212 = vpop.f32.mrb[0].mxu0
        %v1213 = vpop.f32.mrb[0].mxu0
        %v1214 = vadd.f32 %v1057, %v1213
        %v1215 = vpop.f32.mrb[0].mxu0
        %1216 = vmatprep.mubr.bf16.mxu0 0
        %1217 = vmatmul.mubr.bf16.gmra.mrb[0].mxu0 %v1096
        %v1218 = vpop.f32.mrb[0].mxu0
        %v1219 = vadd.f32 %v1057, %v1218
        %v1220 = vpop.f32.mrb[0].mxu0
        %v1221 = vpop.f32.mrb[0].mxu0
        %v1222 = vadd.f32 %v1057, %v1221
        %v1223 = vpop.f32.mrb[0].mxu0
        %1224 = vmatprep.mubr.bf16.mxu0 0
        %1225 = vmatmul.mubr.bf16.gmra.mrb[0].mxu0 %v1099
        %v1226 = vpop.f32.mrb[0].mxu0
        %v1227 = vadd.f32 %v1057, %v1226
        %v1228 = vpop.f32.mrb[0].mxu0
        %v1229 = vpop.f32.mrb[0].mxu0
        %v1230 = vadd.f32 %v1057, %v1229
        %v1231 = vpop.f32.mrb[0].mxu0
        %1232 = vmatprep.mubr.bf16.mxu0 0
        %1233 = vmatmul.mubr.bf16.gmra.mrb[0].mxu0 %v1102
        %v1234 = vpop.f32.mrb[0].mxu0
        %v1235 = vadd.f32 %v1057, %v1234
        %v1236 = vpop.f32.mrb[0].mxu0
        %v1237 = vpop.f32.mrb[0].mxu0
        %v1238 = vpop.f32.mrb[0].mxu0
        %1239 = vdwg.mxu0
        %v1240 = vtanh.pop %v1139
        %v1241 = vtanh.pop %v1142
        %v1242 = vtanh.pop %v1147
        %v1243 = vtanh.pop %v1150
        %v1244 = vtanh.pop %v1155
        %v1245 = vtanh.pop %v1158
        %v1246 = vtanh.pop %v1163
        %v1247 = vtanh.pop %v1166
        %v1248 = vtanh.pop %v1171
        %v1249 = vtanh.pop %v1174
        %v1250 = vtanh.pop %v1179
        %v1251 = vtanh.pop %v1182
        %v1252 = vtanh.pop %v1187
        %v1253 = vtanh.pop %v1190
        %v1254 = vtanh.pop %v1195
        %v1255 = vtanh.pop %v1198
        %v1256 = vtanh.pop %v1203
        %v1257 = vtanh.pop %v1206
        %v1258 = vtanh.pop %v1211
        %v1259 = vtanh.pop %v1214
        %v1260 = vtanh.pop %v1219
        %v1261 = vtanh.pop %v1222
        %v1262 = vtanh.pop %v1227
        %v1263 = vtanh.pop %v1230
        %v1264 = vtanh.pop %v1235
        %1265 = vst [vmem:[%s423] sm:$0xff] %v1240
        %1266 = vst [vmem:[%s423 + $0x8] sm:$0xff] %v1241
        %1267 = vst [vmem:[%s423 + $0x10] sm:$0xff] %v1242
        %1268 = vst [vmem:[%s423 + $0x18] sm:$0xff] %v1243
        %1269 = vst [vmem:[%s423 + $0x20] sm:$0xff] %v1244
        %1270 = vst [vmem:[%s423 + $0x28] sm:$0xff] %v1245
        %1271 = vst [vmem:[%s423 + $0x30] sm:$0xff] %v1246
        %1272 = vst [vmem:[%s423 + $0x38] sm:$0xff] %v1247
        %1273 = vst [vmem:[%s423 + $0x40] sm:$0xff] %v1248
        %1274 = vst [vmem:[%s423 + $0x48] sm:$0xff] %v1249
        %1275 = vst [vmem:[%s423 + $0x50] sm:$0xff] %v1250
        %1276 = vst [vmem:[%s423 + $0x58] sm:$0xff] %v1251
        %1277 = vst [vmem:[%s423 + $0x60] sm:$0xff] %v1252
        %1278 = vst [vmem:[%s423 + $0x68] sm:$0xff] %v1253
        %1279 = vst [vmem:[%s423 + $0x70] sm:$0xff] %v1254
        %1280 = vst [vmem:[%s423 + $0x78] sm:$0xff] %v1255
        %1281 = vst [vmem:[%s423 + $0x80] sm:$0xff] %v1256
        %1282 = vst [vmem:[%s423 + $0x88] sm:$0xff] %v1257
        %1283 = vst [vmem:[%s423 + $0x90] sm:$0xff] %v1258
        %1284 = vst [vmem:[%s423 + $0x98] sm:$0xff] %v1259
        %1285 = vst [vmem:[%s423 + $0xa0] sm:$0xff] %v1260
        %1286 = vst [vmem:[%s423 + $0xa8] sm:$0xff] %v1261
        %1287 = vst [vmem:[%s423 + $0xb0] sm:$0xff] %v1262
        %1288 = vst [vmem:[%s423 + $0xb8] sm:$0xff] %v1263
        %1289 = vst [vmem:[%s423 + $0xc0] sm:$0xff] %v1264
        %s1290 = smul.u32 25, %s24
        %p1291 = scmp.lt.s32.totalorder %s1290, 49
        %s1292 = scalar_select %p1291, %s1290, 49
        %s1293 = smul.addr %s1292, 8
        %s1294 = scalar_lea.vmem %s11, %s1293
        // Predicated region
        $region77: #{grid_deformation_decoder_forward.1} parent=63 // pred_check
          %p1295 = pneg %p278
        $region78: #{grid_deformation_decoder_forward.1} parent=63 // pred_check_branch
          %1297 = sbr.rel (%p1295) target = $region80
        $region79: #{grid_deformation_decoder_forward.1} parent=63 // pred_region
          %s1298 = smul.u32 25, %s24
        $region80: #{grid_deformation_decoder_forward.1} parent=63 // pred_fallthru
          _
      $region64: #{grid_deformation_decoder_forward.1} parent=5 // pred_fallthru
        _
      %p1299 = scmp.le.s32.totalorder 2, %s19
      // Predicated region
      $region81: #{grid_deformation_decoder_forward.1} parent=5 // pred_check
        %p1300 = pneg %p1299
      $region82: #{grid_deformation_decoder_forward.1} parent=5 // pred_check_branch
        %1302 = sbr.rel (%p1300) target = $region84
      $region83: #{grid_deformation_decoder_forward.1} parent=5 // pred_region
        %s1303 = ssub.s32 %s19, 2
        // Predicated region
        $region85: #{grid_deformation_decoder_forward.1} parent=83 // pred_check
          %p1304 = pneg %p284
        $region86: #{grid_deformation_decoder_forward.1} parent=83 // pred_check_branch
          %1306 = sbr.rel (%p1304) target = $region88
        $region87: #{grid_deformation_decoder_forward.1} parent=83 // pred_region
          %s1307 = smul.u32 25, %s25
          %p1308 = scmp.lt.s32.totalorder %s1307, 49
          %s1309 = scalar_select %p1308, %s1307, 49
          %s1310 = smul.addr %s1309, 8
          %s1311 = scalar_lea.vmem %s11, %s1310
        $region88: #{grid_deformation_decoder_forward.1} parent=83 // pred_fallthru
          _
      $region84: #{grid_deformation_decoder_forward.1} parent=5 // pred_fallthru
        _
    $region6: #{grid_deformation_decoder_forward.1} parent=1 // loop_footer
      %s23 = sadd.s32 1, %s19
    $region7: #{grid_deformation_decoder_forward.1} parent=1 // loop_footer_branch
      %18 = sbr.rel target = $region3
    $region8: #{grid_deformation_decoder_forward.1} parent=1 // loop_exit
      _
    %1312 = vsyncpa [#allocation5], 1
    %s1313 = scalar_lea.sflag [#allocation5], 1
    %1314 = vsyncpa %s1313, 1
    %1315 = vsyncpa [#allocation7], 1

</llo_original>
